<compile_context>
chip_gen: v5e
topology: v5e:2x2
jax: 0.10.0
libtpu: 0.0.40
codegen_flags: <defaults>
</compile_context>

<pallas_src>
import functools
import math

import numpy as np
import jax
import jax.numpy as jnp
from jax import lax
from jax.experimental import pallas as pl
from jax.experimental.pallas import tpu as pltpu

LN_EPS = 1e-5        # nn.LayerNorm default
NEG_MASK = -1e30     # finite masked-score value (NaN-safe; diagonal always allowed)


def _ln(x, w, b):
    """LayerNorm with single-pass variance: var = E[x^2] - E[x]^2."""
    mu = jnp.mean(x, axis=-1, keepdims=True)
    var = jnp.mean(x * x, axis=-1, keepdims=True) - mu * mu
    return (x - mu) * lax.rsqrt(var + LN_EPS) * w + b


def _encoder_kernel(num_heads,
                    x_ref, mask_ref, ln1_w, ln1_b,
                    w_qkv, b_qkv, wo, bo,
                    ln2_w, ln2_b, w1, b1, w2, b2,
                    o_ref):
    """One grid step processes TB batch elements as a flat (R = TB*S, D) row slab."""
    R, D = x_ref.shape
    hd = D // num_heads
    bf16 = jnp.bfloat16

    x = x_ref[...]                                   # (R, D) f32

    # ---- LayerNorm1 ----
    xn = _ln(x, ln1_w[...], ln1_b[...])

    # ---- Fused QKV: one (R, D) @ (D, 3D) bf16 matmul, f32 accumulate ----
    qkv = jnp.dot(xn.astype(bf16), w_qkv[...],
                  preferred_element_type=jnp.float32) + b_qkv[...]
    qkv = qkv.astype(bf16)                           # consumed only by matmuls
    q = qkv[:, :D]                                   # 1/sqrt(hd) already folded in
    k = qkv[:, D:2 * D]
    v = qkv[:, 2 * D:]

    mask = mask_ref[...]                             # additive 0 / -1e30, (R, R) f32
    wo_all = wo[...]                                 # (D, D) bf16

    # Per-head attention with the output projection folded into the loop
    # (accumulate straight into an (R, D) f32 slab).
    # TODO(synk): a D-major relayout (lane-dense activations, unmasked vst) is the
    # larger remaining lever for D=32; kept row-major here to stay non-invasive.
    attn = jnp.broadcast_to(bo[...], (R, D)).astype(jnp.float32)
    for h in range(num_heads):
        hs = h * hd
        s = jnp.dot(q[:, hs:hs + hd], k[:, hs:hs + hd].T,
                    preferred_element_type=jnp.float32) + mask        # (R, R)
        m = jnp.max(s, axis=-1, keepdims=True)
        p = jnp.exp(s - m)
        # softmax normalization via EUP approximate reciprocal (frees VALU divides)
        p = p * pl.reciprocal(jnp.sum(p, axis=-1, keepdims=True), approx=True)
        ph = jnp.dot(p.astype(bf16), v[:, hs:hs + hd],
                     preferred_element_type=jnp.float32)               # (R, hd)
        attn = attn + jnp.dot(ph.astype(bf16), wo_all[hs:hs + hd, :],
                              preferred_element_type=jnp.float32)      # (R, D)

    y = attn + xn                                    # skip connection (post-LN skip)

    # ---- LayerNorm2 ----
    yn = _ln(y, ln2_w[...], ln2_b[...])

    # ---- Feed-forward: layer2(relu(layer1(x))) + skip ----
    h1 = jnp.maximum(
        jnp.dot(yn.astype(bf16), w1[...], preferred_element_type=jnp.float32) + b1[...],
        0.0)
    h2 = jnp.dot(h1.astype(bf16), w2[...], preferred_element_type=jnp.float32) + b2[...]
    o_ref[...] = h2 + yn


def _choose_tb(batch, seq_len, target_rows=128, min_grid_steps=2):
    """Largest divisor of `batch` with TB*seq_len <= target_rows, while keeping at
    least `min_grid_steps` grid steps whenever the batch allows it (so the single
    'parallel' grid axis has work for both of v7x's TensorCores).  target_rows is
    kept at 128 (MXU-native M on v5e, fine on v6e/v7x) to bound the O(R^2)
    block-diagonal softmax waste, which grows linearly with TB."""
    best = 1
    for d in range(1, batch + 1):
        if batch % d != 0:
            continue
        if d * seq_len > max(target_rows, seq_len):
            continue
        if d > 1 and batch // d < min_grid_steps:
            continue
        best = d
    return best


def _block_causal_mask(tb, seq_len):
    """Additive block-diagonal causal mask for a (tb*seq_len)^2 score matrix.

    A query row may only attend to key rows of the SAME batch element (block
    diagonal) at positions <= its own (strict causal, matches triu(k=1)).
    Built with numpy at trace time -> embedded as a constant, zero runtime cost."""
    R = tb * seq_len
    r = np.arange(R)
    same_batch = (r[:, None] // seq_len) == (r[None, :] // seq_len)
    causal = (r[None, :] % seq_len) <= (r[:, None] % seq_len)
    allowed = same_batch & causal
    return jnp.asarray(np.where(allowed, 0.0, NEG_MASK).astype(np.float32))


def prepare_params(params, num_heads):
    """One-time parameter prep (hoisted out of the per-call path):
    fold 1/sqrt(hd) into the Q projection, fuse Q/K/V into one (D, 3D) slab,
    and cast matmul weight slabs to bf16.  Biases / LN params stay f32."""
    D = params["wq_t"].shape[0]
    hd = D // num_heads
    scale = 1.0 / math.sqrt(hd)
    w_qkv = jnp.concatenate(
        [params["wq_t"] * scale, params["wk_t"], params["wv_t"]], axis=1)
    b_qkv = jnp.concatenate(
        [params["bq"] * scale, params["bk"], params["bv"]], axis=1)
    return {
        "ln1_w": params["ln1_w"], "ln1_b": params["ln1_b"],
        "w_qkv": w_qkv.astype(jnp.bfloat16), "b_qkv": b_qkv,
        "wo_t": params["wo_t"].astype(jnp.bfloat16), "bo": params["bo"],
        "ln2_w": params["ln2_w"], "ln2_b": params["ln2_b"],
        "w1_t": params["w1_t"].astype(jnp.bfloat16), "b1": params["b1"],
        "w2_t": params["w2_t"].astype(jnp.bfloat16), "b2": params["b2"],
    }


def encoder_block_pallas(x, prep, num_heads):
    """x: (B, S, D) float32 post-embedding activations -> (B, S, D)."""
    B, S, D = x.shape
    TB = _choose_tb(B, S)
    R = TB * S
    mask = _block_causal_mask(TB, S)

    # Row-independent math runs on a flat (B*S, D) slab; TB batches per grid step.
    x_flat = x.reshape(B * S, D)

    full = lambda shape: pl.BlockSpec(shape, lambda b: (0, 0))
    in_specs = [
        pl.BlockSpec((R, D), lambda b: (b, 0)),          # TB batches worth of rows
        full((R, R)),                                    # additive block-causal mask
        full((1, D)), full((1, D)),                      # ln1 w, b
        full((D, 3 * D)), full((1, 3 * D)),              # fused Wqkv^T (bf16), bqkv
        full((D, D)), full((1, D)),                      # Wo^T (bf16), bo
        full((1, D)), full((1, D)),                      # ln2 w, b
        full((D, D)), full((1, D)),                      # W1^T (bf16), b1
        full((D, D)), full((1, D)),                      # W2^T (bf16), b2
    ]

    kernel = functools.partial(_encoder_kernel, num_heads)
    out_flat = pl.pallas_call(
        kernel,
        out_shape=jax.ShapeDtypeStruct((B * S, D), jnp.float32),
        grid_spec=pltpu.PrefetchScalarGridSpec(
            num_scalar_prefetch=0,
            grid=(B // TB,),
            in_specs=in_specs,
            out_specs=pl.BlockSpec((R, D), lambda b: (b, 0)),
        ),
        # Batch-block axis stays parallel so v7x's two TensorCores split it
        # (grid has >= 2 steps whenever the batch allows).
        compiler_params=pltpu.CompilerParams(dimension_semantics=("parallel",)),
    )(
        x_flat, mask,
        prep["ln1_w"], prep["ln1_b"],
        prep["w_qkv"], prep["b_qkv"],
        prep["wo_t"], prep["bo"],
        prep["ln2_w"], prep["ln2_b"],
        prep["w1_t"], prep["b1"],
        prep["w2_t"], prep["b2"],
    )
    return out_flat.reshape(B, S, D)


def reference_forward(x, params, num_heads):
    """Pure-JAX f32 reference of the same math, for a correctness check."""
    B, S, D = x.shape
    hd = D // num_heads
    scale = 1.0 / math.sqrt(hd)

    def ln(v, w, b):
        mu = jnp.mean(v, axis=-1, keepdims=True)
        var = jnp.mean((v - mu) ** 2, axis=-1, keepdims=True)
        return (v - mu) / jnp.sqrt(var + LN_EPS) * w[0] + b[0]

    xn = ln(x, params["ln1_w"], params["ln1_b"])
    q = xn @ params["wq_t"] + params["bq"][0]
    k = xn @ params["wk_t"] + params["bk"][0]
    v = xn @ params["wv_t"] + params["bv"][0]
    q = q.reshape(B, S, num_heads, hd).transpose(0, 2, 1, 3) * scale
    k = k.reshape(B, S, num_heads, hd).transpose(0, 2, 1, 3)
    v = v.reshape(B, S, num_heads, hd).transpose(0, 2, 1, 3)
    s = jnp.einsum("bhqd,bhkd->bhqk", q, k)
    mask = jnp.triu(jnp.ones((S, S), bool), k=1)
    s = jnp.where(mask[None, None], -jnp.inf, s)
    p = jax.nn.softmax(s, axis=-1)
    a = jnp.einsum("bhqk,bhkd->bhqd", p, v).transpose(0, 2, 1, 3).reshape(B, S, D)
    a = a @ params["wo_t"] + params["bo"][0]
    y = a + xn
    yn = ln(y, params["ln2_w"], params["ln2_b"])
    h1 = jax.nn.relu(yn @ params["w1_t"] + params["b1"][0])
    h2 = h1 @ params["w2_t"] + params["b2"][0]
    return h2 + yn


if __name__ == "__main__":
    # Small shapes consistent with the module.
    batch, seq_len, dim_model, heads_en = 2, 8, 32, 4
    total_ex, total_cat = 50, 10

    key = jax.random.PRNGKey(0)
    ks = jax.random.split(key, 22)

    def rn(k, shape, scale=0.1):
        return jax.random.normal(k, shape, jnp.float32) * scale

    # Embedding tables (Embedding.__init__ shapes).
    embd_ex = rn(ks[0], (total_ex, dim_model), 1.0)
    embd_cat = rn(ks[1], (total_cat, dim_model), 1.0)
    embd_pos = rn(ks[2], (seq_len, dim_model), 1.0)

    # Attention / LayerNorm / FFN parameters (stored pre-transposed: x @ W^T == x @ w_t).
    params = {
        "ln1_w": 1.0 + rn(ks[17], (1, dim_model)),
        "ln1_b": rn(ks[18], (1, dim_model)),
        "wq_t": rn(ks[3], (dim_model, dim_model)),
        "wk_t": rn(ks[4], (dim_model, dim_model)),
        "wv_t": rn(ks[5], (dim_model, dim_model)),
        "bq": rn(ks[6], (1, dim_model)),
        "bk": rn(ks[7], (1, dim_model)),
        "bv": rn(ks[8], (1, dim_model)),
        "wo_t": rn(ks[9], (dim_model, dim_model)),
        "bo": rn(ks[10], (1, dim_model)),
        "ln2_w": 1.0 + rn(ks[19], (1, dim_model)),
        "ln2_b": rn(ks[20], (1, dim_model)),
        "w1_t": rn(ks[11], (dim_model, dim_model)),
        "b1": rn(ks[12], (1, dim_model)),
        "w2_t": rn(ks[13], (dim_model, dim_model)),
        "b2": rn(ks[14], (1, dim_model)),
    }

    # Integer token inputs (first_block=True path).
    in_ex = jax.random.randint(ks[15], (batch, seq_len), 0, total_ex)
    in_cat = jax.random.randint(ks[16], (batch, seq_len), 0, total_cat)

    # Plain-JAX glue: embedding lookups + positional embedding broadcast add.
    pos_ids = jnp.arange(seq_len)
    x = embd_ex[in_ex] + embd_cat[in_cat] + embd_pos[pos_ids][None, :, :]  # (B, S, D)

    prep = prepare_params(params, heads_en)        # one-time parameter prep
    out = encoder_block_pallas(x, prep, heads_en)
    out = jax.block_until_ready(out)

    ref = reference_forward(x, params, heads_en)
    assert out.shape == (batch, seq_len, dim_model)
    # Tolerance accounts for bf16 MXU operands (f32 accumulation) and the EUP
    # approximate-reciprocal softmax normalization vs. the pure-f32 reference.
    assert jnp.allclose(out, ref, atol=3e-2, rtol=3e-2), "mismatch vs reference"

    print("KERNEL_OK")
</pallas_src>

<mosaic_0001>
module attributes {stable_mosaic.version = 11 : i64} {
  func.func @_encoder_kernel(%arg0: i32, %arg1: memref<8x32xf32, #tpu.memory_space<vmem>>, %arg2: memref<8x8xf32, #tpu.memory_space<vmem>>, %arg3: memref<1x32xf32, #tpu.memory_space<vmem>>, %arg4: memref<1x32xf32, #tpu.memory_space<vmem>>, %arg5: memref<32x96xbf16, #tpu.memory_space<vmem>>, %arg6: memref<1x96xf32, #tpu.memory_space<vmem>>, %arg7: memref<32x32xbf16, #tpu.memory_space<vmem>>, %arg8: memref<1x32xf32, #tpu.memory_space<vmem>>, %arg9: memref<1x32xf32, #tpu.memory_space<vmem>>, %arg10: memref<1x32xf32, #tpu.memory_space<vmem>>, %arg11: memref<32x32xbf16, #tpu.memory_space<vmem>>, %arg12: memref<1x32xf32, #tpu.memory_space<vmem>>, %arg13: memref<32x32xbf16, #tpu.memory_space<vmem>>, %arg14: memref<1x32xf32, #tpu.memory_space<vmem>>, %arg15: memref<8x32xf32, #tpu.memory_space<vmem>>) attributes {dimension_semantics = [#tpu.dimension_semantics<parallel>], iteration_bounds = array<i64: 2>, scalar_prefetch = 0 : i64, scratch_operands = 0 : i64, tpu.core_type = #tpu.core_type<tc>, window_params = [{transform_indices = @transform_0, window_bounds = array<i64: 8, 32>}, {pipeline_mode = #tpu.pipeline_mode<synchronous>, transform_indices = @transform_1, window_bounds = array<i64: 8, 8>}, {pipeline_mode = #tpu.pipeline_mode<synchronous>, transform_indices = @transform_2, window_bounds = array<i64: 1, 32>}, {pipeline_mode = #tpu.pipeline_mode<synchronous>, transform_indices = @transform_3, window_bounds = array<i64: 1, 32>}, {pipeline_mode = #tpu.pipeline_mode<synchronous>, transform_indices = @transform_4, window_bounds = array<i64: 32, 96>}, {pipeline_mode = #tpu.pipeline_mode<synchronous>, transform_indices = @transform_5, window_bounds = array<i64: 1, 96>}, {pipeline_mode = #tpu.pipeline_mode<synchronous>, transform_indices = @transform_6, window_bounds = array<i64: 32, 32>}, {pipeline_mode = #tpu.pipeline_mode<synchronous>, transform_indices = @transform_7, window_bounds = array<i64: 1, 32>}, {pipeline_mode = #tpu.pipeline_mode<synchronous>, transform_indices = @transform_8, window_bounds = array<i64: 1, 32>}, {pipeline_mode = #tpu.pipeline_mode<synchronous>, transform_indices = @transform_9, window_bounds = array<i64: 1, 32>}, {pipeline_mode = #tpu.pipeline_mode<synchronous>, transform_indices = @transform_10, window_bounds = array<i64: 32, 32>}, {pipeline_mode = #tpu.pipeline_mode<synchronous>, transform_indices = @transform_11, window_bounds = array<i64: 1, 32>}, {pipeline_mode = #tpu.pipeline_mode<synchronous>, transform_indices = @transform_12, window_bounds = array<i64: 32, 32>}, {pipeline_mode = #tpu.pipeline_mode<synchronous>, transform_indices = @transform_13, window_bounds = array<i64: 1, 32>}, {transform_indices = @transform_14, window_bounds = array<i64: 8, 32>}]} {
    %c0 = arith.constant 0 : index
    %c0_0 = arith.constant 0 : index
    %0 = vector.load %arg1[%c0, %c0_0] : memref<8x32xf32, #tpu.memory_space<vmem>>, vector<8x32xf32>
    %c0_1 = arith.constant 0 : index
    %c0_2 = arith.constant 0 : index
    %1 = vector.load %arg3[%c0_1, %c0_2] : memref<1x32xf32, #tpu.memory_space<vmem>>, vector<1x32xf32>
    %c0_3 = arith.constant 0 : index
    %c0_4 = arith.constant 0 : index
    %2 = vector.load %arg4[%c0_3, %c0_4] : memref<1x32xf32, #tpu.memory_space<vmem>>, vector<1x32xf32>
    %cst = arith.constant dense<0.000000e+00> : vector<8xf32>
    %3 = vector.multi_reduction <add>, %0, %cst [1] : vector<8x32xf32> to vector<8xf32>
    %4 = vector.shape_cast %3 : vector<8xf32> to vector<8x1xf32>
    %cst_5 = arith.constant 3.200000e+01 : f32
    %5 = vector.broadcast %cst_5 : f32 to vector<8x1xf32>
    %6 = arith.divf %4, %5 : vector<8x1xf32>
    %7 = arith.mulf %0, %0 : vector<8x32xf32>
    %cst_6 = arith.constant dense<0.000000e+00> : vector<8xf32>
    %8 = vector.multi_reduction <add>, %7, %cst_6 [1] : vector<8x32xf32> to vector<8xf32>
    %9 = vector.shape_cast %8 : vector<8xf32> to vector<8x1xf32>
    %cst_7 = arith.constant 3.200000e+01 : f32
    %10 = vector.broadcast %cst_7 : f32 to vector<8x1xf32>
    %11 = arith.divf %9, %10 : vector<8x1xf32>
    %12 = arith.mulf %6, %6 : vector<8x1xf32>
    %13 = arith.subf %11, %12 : vector<8x1xf32>
    %14 = vector.broadcast %6 : vector<8x1xf32> to vector<8x32xf32>
    %15 = arith.subf %0, %14 : vector<8x32xf32>
    %cst_8 = arith.constant 9.99999974E-6 : f32
    %16 = vector.broadcast %cst_8 : f32 to vector<8x1xf32>
    %17 = arith.addf %13, %16 : vector<8x1xf32>
    %18 = math.rsqrt %17 : vector<8x1xf32>
    %19 = vector.broadcast %18 : vector<8x1xf32> to vector<8x32xf32>
    %20 = arith.mulf %15, %19 : vector<8x32xf32>
    %21 = vector.broadcast %1 : vector<1x32xf32> to vector<8x32xf32>
    %22 = arith.mulf %20, %21 : vector<8x32xf32>
    %23 = vector.broadcast %2 : vector<1x32xf32> to vector<8x32xf32>
    %24 = arith.addf %22, %23 : vector<8x32xf32>
    %25 = arith.truncf %24 : vector<8x32xf32> to vector<8x32xbf16>
    %c0_9 = arith.constant 0 : index
    %c0_10 = arith.constant 0 : index
    %26 = vector.load %arg5[%c0_9, %c0_10] : memref<32x96xbf16, #tpu.memory_space<vmem>>, vector<32x96xbf16>
    %cst_11 = arith.constant dense<0.000000e+00> : vector<8x96xf32>
    %27 = tpu.matmul %25, %26, %cst_11 {dimension_numbers = #tpu.dot_dimension_numbers<[1], [0], [0], [1], [0, 0, 1, 1], [], []>} : vector<8x32xbf16>, vector<32x96xbf16>, vector<8x96xf32> -> vector<8x96xf32>
    %c0_12 = arith.constant 0 : index
    %c0_13 = arith.constant 0 : index
    %28 = vector.load %arg6[%c0_12, %c0_13] : memref<1x96xf32, #tpu.memory_space<vmem>>, vector<1x96xf32>
    %29 = vector.broadcast %28 : vector<1x96xf32> to vector<8x96xf32>
    %30 = arith.addf %27, %29 : vector<8x96xf32>
    %31 = arith.truncf %30 : vector<8x96xf32> to vector<8x96xbf16>
    %32 = vector.extract_strided_slice %31 {offsets = [0, 0], sizes = [8, 32], strides = [1, 1]} : vector<8x96xbf16> to vector<8x32xbf16>
    %33 = vector.extract_strided_slice %31 {offsets = [0, 32], sizes = [8, 32], strides = [1, 1]} : vector<8x96xbf16> to vector<8x32xbf16>
    %34 = vector.extract_strided_slice %31 {offsets = [0, 64], sizes = [8, 32], strides = [1, 1]} : vector<8x96xbf16> to vector<8x32xbf16>
    %c0_14 = arith.constant 0 : index
    %c0_15 = arith.constant 0 : index
    %35 = vector.load %arg2[%c0_14, %c0_15] : memref<8x8xf32, #tpu.memory_space<vmem>>, vector<8x8xf32>
    %c0_16 = arith.constant 0 : index
    %c0_17 = arith.constant 0 : index
    %36 = vector.load %arg7[%c0_16, %c0_17] : memref<32x32xbf16, #tpu.memory_space<vmem>>, vector<32x32xbf16>
    %c0_18 = arith.constant 0 : index
    %c0_19 = arith.constant 0 : index
    %37 = vector.load %arg8[%c0_18, %c0_19] : memref<1x32xf32, #tpu.memory_space<vmem>>, vector<1x32xf32>
    %38 = vector.shape_cast %37 : vector<1x32xf32> to vector<1x32xf32>
    %39 = vector.broadcast %38 : vector<1x32xf32> to vector<8x32xf32>
    %40 = vector.extract_strided_slice %32 {offsets = [0, 0], sizes = [8, 8], strides = [1, 1]} : vector<8x32xbf16> to vector<8x8xbf16>
    %41 = vector.extract_strided_slice %33 {offsets = [0, 0], sizes = [8, 8], strides = [1, 1]} : vector<8x32xbf16> to vector<8x8xbf16>
    %42 = tpu.transpose %41, [1, 0] : vector<8x8xbf16> -> vector<8x8xbf16>
    %cst_20 = arith.constant dense<0.000000e+00> : vector<8x8xf32>
    %43 = tpu.matmul %40, %42, %cst_20 {dimension_numbers = #tpu.dot_dimension_numbers<[1], [0], [0], [1], [0, 0, 1, 1], [], []>} : vector<8x8xbf16>, vector<8x8xbf16>, vector<8x8xf32> -> vector<8x8xf32>
    %44 = arith.addf %43, %35 : vector<8x8xf32>
    %cst_21 = arith.constant dense<0xFF800000> : vector<8xf32>
    %45 = vector.multi_reduction <maximumf>, %44, %cst_21 [1] : vector<8x8xf32> to vector<8xf32>
    %46 = vector.shape_cast %45 : vector<8xf32> to vector<8x1xf32>
    %47 = vector.broadcast %46 : vector<8x1xf32> to vector<8x8xf32>
    %48 = arith.subf %44, %47 : vector<8x8xf32>
    %49 = math.exp %48 : vector<8x8xf32>
    %cst_22 = arith.constant dense<0.000000e+00> : vector<8xf32>
    %50 = vector.multi_reduction <add>, %49, %cst_22 [1] : vector<8x8xf32> to vector<8xf32>
    %51 = vector.shape_cast %50 : vector<8xf32> to vector<8x1xf32>
    %52 = tpu.reciprocal %51 {approx = true} : vector<8x1xf32> -> vector<8x1xf32>
    %53 = vector.broadcast %52 : vector<8x1xf32> to vector<8x8xf32>
    %54 = arith.mulf %49, %53 : vector<8x8xf32>
    %55 = arith.truncf %54 : vector<8x8xf32> to vector<8x8xbf16>
    %56 = vector.extract_strided_slice %34 {offsets = [0, 0], sizes = [8, 8], strides = [1, 1]} : vector<8x32xbf16> to vector<8x8xbf16>
    %cst_23 = arith.constant dense<0.000000e+00> : vector<8x8xf32>
    %57 = tpu.matmul %55, %56, %cst_23 {dimension_numbers = #tpu.dot_dimension_numbers<[1], [0], [0], [1], [0, 0, 1, 1], [], []>} : vector<8x8xbf16>, vector<8x8xbf16>, vector<8x8xf32> -> vector<8x8xf32>
    %58 = arith.truncf %57 : vector<8x8xf32> to vector<8x8xbf16>
    %59 = vector.extract_strided_slice %36 {offsets = [0, 0], sizes = [8, 32], strides = [1, 1]} : vector<32x32xbf16> to vector<8x32xbf16>
    %cst_24 = arith.constant dense<0.000000e+00> : vector<8x32xf32>
    %60 = tpu.matmul %58, %59, %cst_24 {dimension_numbers = #tpu.dot_dimension_numbers<[1], [0], [0], [1], [0, 0, 1, 1], [], []>} : vector<8x8xbf16>, vector<8x32xbf16>, vector<8x32xf32> -> vector<8x32xf32>
    %61 = arith.addf %39, %60 : vector<8x32xf32>
    %62 = vector.extract_strided_slice %32 {offsets = [0, 8], sizes = [8, 8], strides = [1, 1]} : vector<8x32xbf16> to vector<8x8xbf16>
    %63 = vector.extract_strided_slice %33 {offsets = [0, 8], sizes = [8, 8], strides = [1, 1]} : vector<8x32xbf16> to vector<8x8xbf16>
    %64 = tpu.transpose %63, [1, 0] : vector<8x8xbf16> -> vector<8x8xbf16>
    %cst_25 = arith.constant dense<0.000000e+00> : vector<8x8xf32>
    %65 = tpu.matmul %62, %64, %cst_25 {dimension_numbers = #tpu.dot_dimension_numbers<[1], [0], [0], [1], [0, 0, 1, 1], [], []>} : vector<8x8xbf16>, vector<8x8xbf16>, vector<8x8xf32> -> vector<8x8xf32>
    %66 = arith.addf %65, %35 : vector<8x8xf32>
    %cst_26 = arith.constant dense<0xFF800000> : vector<8xf32>
    %67 = vector.multi_reduction <maximumf>, %66, %cst_26 [1] : vector<8x8xf32> to vector<8xf32>
    %68 = vector.shape_cast %67 : vector<8xf32> to vector<8x1xf32>
    %69 = vector.broadcast %68 : vector<8x1xf32> to vector<8x8xf32>
    %70 = arith.subf %66, %69 : vector<8x8xf32>
    %71 = math.exp %70 : vector<8x8xf32>
    %cst_27 = arith.constant dense<0.000000e+00> : vector<8xf32>
    %72 = vector.multi_reduction <add>, %71, %cst_27 [1] : vector<8x8xf32> to vector<8xf32>
    %73 = vector.shape_cast %72 : vector<8xf32> to vector<8x1xf32>
    %74 = tpu.reciprocal %73 {approx = true} : vector<8x1xf32> -> vector<8x1xf32>
    %75 = vector.broadcast %74 : vector<8x1xf32> to vector<8x8xf32>
    %76 = arith.mulf %71, %75 : vector<8x8xf32>
    %77 = arith.truncf %76 : vector<8x8xf32> to vector<8x8xbf16>
    %78 = vector.extract_strided_slice %34 {offsets = [0, 8], sizes = [8, 8], strides = [1, 1]} : vector<8x32xbf16> to vector<8x8xbf16>
    %cst_28 = arith.constant dense<0.000000e+00> : vector<8x8xf32>
    %79 = tpu.matmul %77, %78, %cst_28 {dimension_numbers = #tpu.dot_dimension_numbers<[1], [0], [0], [1], [0, 0, 1, 1], [], []>} : vector<8x8xbf16>, vector<8x8xbf16>, vector<8x8xf32> -> vector<8x8xf32>
    %80 = arith.truncf %79 : vector<8x8xf32> to vector<8x8xbf16>
    %81 = vector.extract_strided_slice %36 {offsets = [8, 0], sizes = [8, 32], strides = [1, 1]} : vector<32x32xbf16> to vector<8x32xbf16>
    %cst_29 = arith.constant dense<0.000000e+00> : vector<8x32xf32>
    %82 = tpu.matmul %80, %81, %cst_29 {dimension_numbers = #tpu.dot_dimension_numbers<[1], [0], [0], [1], [0, 0, 1, 1], [], []>} : vector<8x8xbf16>, vector<8x32xbf16>, vector<8x32xf32> -> vector<8x32xf32>
    %83 = arith.addf %61, %82 : vector<8x32xf32>
    %84 = vector.extract_strided_slice %32 {offsets = [0, 16], sizes = [8, 8], strides = [1, 1]} : vector<8x32xbf16> to vector<8x8xbf16>
    %85 = vector.extract_strided_slice %33 {offsets = [0, 16], sizes = [8, 8], strides = [1, 1]} : vector<8x32xbf16> to vector<8x8xbf16>
    %86 = tpu.transpose %85, [1, 0] : vector<8x8xbf16> -> vector<8x8xbf16>
    %cst_30 = arith.constant dense<0.000000e+00> : vector<8x8xf32>
    %87 = tpu.matmul %84, %86, %cst_30 {dimension_numbers = #tpu.dot_dimension_numbers<[1], [0], [0], [1], [0, 0, 1, 1], [], []>} : vector<8x8xbf16>, vector<8x8xbf16>, vector<8x8xf32> -> vector<8x8xf32>
    %88 = arith.addf %87, %35 : vector<8x8xf32>
    %cst_31 = arith.constant dense<0xFF800000> : vector<8xf32>
    %89 = vector.multi_reduction <maximumf>, %88, %cst_31 [1] : vector<8x8xf32> to vector<8xf32>
    %90 = vector.shape_cast %89 : vector<8xf32> to vector<8x1xf32>
    %91 = vector.broadcast %90 : vector<8x1xf32> to vector<8x8xf32>
    %92 = arith.subf %88, %91 : vector<8x8xf32>
    %93 = math.exp %92 : vector<8x8xf32>
    %cst_32 = arith.constant dense<0.000000e+00> : vector<8xf32>
    %94 = vector.multi_reduction <add>, %93, %cst_32 [1] : vector<8x8xf32> to vector<8xf32>
    %95 = vector.shape_cast %94 : vector<8xf32> to vector<8x1xf32>
    %96 = tpu.reciprocal %95 {approx = true} : vector<8x1xf32> -> vector<8x1xf32>
    %97 = vector.broadcast %96 : vector<8x1xf32> to vector<8x8xf32>
    %98 = arith.mulf %93, %97 : vector<8x8xf32>
    %99 = arith.truncf %98 : vector<8x8xf32> to vector<8x8xbf16>
    %100 = vector.extract_strided_slice %34 {offsets = [0, 16], sizes = [8, 8], strides = [1, 1]} : vector<8x32xbf16> to vector<8x8xbf16>
    %cst_33 = arith.constant dense<0.000000e+00> : vector<8x8xf32>
    %101 = tpu.matmul %99, %100, %cst_33 {dimension_numbers = #tpu.dot_dimension_numbers<[1], [0], [0], [1], [0, 0, 1, 1], [], []>} : vector<8x8xbf16>, vector<8x8xbf16>, vector<8x8xf32> -> vector<8x8xf32>
    %102 = arith.truncf %101 : vector<8x8xf32> to vector<8x8xbf16>
    %103 = vector.extract_strided_slice %36 {offsets = [16, 0], sizes = [8, 32], strides = [1, 1]} : vector<32x32xbf16> to vector<8x32xbf16>
    %cst_34 = arith.constant dense<0.000000e+00> : vector<8x32xf32>
    %104 = tpu.matmul %102, %103, %cst_34 {dimension_numbers = #tpu.dot_dimension_numbers<[1], [0], [0], [1], [0, 0, 1, 1], [], []>} : vector<8x8xbf16>, vector<8x32xbf16>, vector<8x32xf32> -> vector<8x32xf32>
    %105 = arith.addf %83, %104 : vector<8x32xf32>
    %106 = vector.extract_strided_slice %32 {offsets = [0, 24], sizes = [8, 8], strides = [1, 1]} : vector<8x32xbf16> to vector<8x8xbf16>
    %107 = vector.extract_strided_slice %33 {offsets = [0, 24], sizes = [8, 8], strides = [1, 1]} : vector<8x32xbf16> to vector<8x8xbf16>
    %108 = tpu.transpose %107, [1, 0] : vector<8x8xbf16> -> vector<8x8xbf16>
    %cst_35 = arith.constant dense<0.000000e+00> : vector<8x8xf32>
    %109 = tpu.matmul %106, %108, %cst_35 {dimension_numbers = #tpu.dot_dimension_numbers<[1], [0], [0], [1], [0, 0, 1, 1], [], []>} : vector<8x8xbf16>, vector<8x8xbf16>, vector<8x8xf32> -> vector<8x8xf32>
    %110 = arith.addf %109, %35 : vector<8x8xf32>
    %cst_36 = arith.constant dense<0xFF800000> : vector<8xf32>
    %111 = vector.multi_reduction <maximumf>, %110, %cst_36 [1] : vector<8x8xf32> to vector<8xf32>
    %112 = vector.shape_cast %111 : vector<8xf32> to vector<8x1xf32>
    %113 = vector.broadcast %112 : vector<8x1xf32> to vector<8x8xf32>
    %114 = arith.subf %110, %113 : vector<8x8xf32>
    %115 = math.exp %114 : vector<8x8xf32>
    %cst_37 = arith.constant dense<0.000000e+00> : vector<8xf32>
    %116 = vector.multi_reduction <add>, %115, %cst_37 [1] : vector<8x8xf32> to vector<8xf32>
    %117 = vector.shape_cast %116 : vector<8xf32> to vector<8x1xf32>
    %118 = tpu.reciprocal %117 {approx = true} : vector<8x1xf32> -> vector<8x1xf32>
    %119 = vector.broadcast %118 : vector<8x1xf32> to vector<8x8xf32>
    %120 = arith.mulf %115, %119 : vector<8x8xf32>
    %121 = arith.truncf %120 : vector<8x8xf32> to vector<8x8xbf16>
    %122 = vector.extract_strided_slice %34 {offsets = [0, 24], sizes = [8, 8], strides = [1, 1]} : vector<8x32xbf16> to vector<8x8xbf16>
    %cst_38 = arith.constant dense<0.000000e+00> : vector<8x8xf32>
    %123 = tpu.matmul %121, %122, %cst_38 {dimension_numbers = #tpu.dot_dimension_numbers<[1], [0], [0], [1], [0, 0, 1, 1], [], []>} : vector<8x8xbf16>, vector<8x8xbf16>, vector<8x8xf32> -> vector<8x8xf32>
    %124 = arith.truncf %123 : vector<8x8xf32> to vector<8x8xbf16>
    %125 = vector.extract_strided_slice %36 {offsets = [24, 0], sizes = [8, 32], strides = [1, 1]} : vector<32x32xbf16> to vector<8x32xbf16>
    %cst_39 = arith.constant dense<0.000000e+00> : vector<8x32xf32>
    %126 = tpu.matmul %124, %125, %cst_39 {dimension_numbers = #tpu.dot_dimension_numbers<[1], [0], [0], [1], [0, 0, 1, 1], [], []>} : vector<8x8xbf16>, vector<8x32xbf16>, vector<8x32xf32> -> vector<8x32xf32>
    %127 = arith.addf %105, %126 : vector<8x32xf32>
    %128 = arith.addf %127, %24 : vector<8x32xf32>
    %c0_40 = arith.constant 0 : index
    %c0_41 = arith.constant 0 : index
    %129 = vector.load %arg9[%c0_40, %c0_41] : memref<1x32xf32, #tpu.memory_space<vmem>>, vector<1x32xf32>
    %c0_42 = arith.constant 0 : index
    %c0_43 = arith.constant 0 : index
    %130 = vector.load %arg10[%c0_42, %c0_43] : memref<1x32xf32, #tpu.memory_space<vmem>>, vector<1x32xf32>
    %cst_44 = arith.constant dense<0.000000e+00> : vector<8xf32>
    %131 = vector.multi_reduction <add>, %128, %cst_44 [1] : vector<8x32xf32> to vector<8xf32>
    %132 = vector.shape_cast %131 : vector<8xf32> to vector<8x1xf32>
    %cst_45 = arith.constant 3.200000e+01 : f32
    %133 = vector.broadcast %cst_45 : f32 to vector<8x1xf32>
    %134 = arith.divf %132, %133 : vector<8x1xf32>
    %135 = arith.mulf %128, %128 : vector<8x32xf32>
    %cst_46 = arith.constant dense<0.000000e+00> : vector<8xf32>
    %136 = vector.multi_reduction <add>, %135, %cst_46 [1] : vector<8x32xf32> to vector<8xf32>
    %137 = vector.shape_cast %136 : vector<8xf32> to vector<8x1xf32>
    %cst_47 = arith.constant 3.200000e+01 : f32
    %138 = vector.broadcast %cst_47 : f32 to vector<8x1xf32>
    %139 = arith.divf %137, %138 : vector<8x1xf32>
    %140 = arith.mulf %134, %134 : vector<8x1xf32>
    %141 = arith.subf %139, %140 : vector<8x1xf32>
    %142 = vector.broadcast %134 : vector<8x1xf32> to vector<8x32xf32>
    %143 = arith.subf %128, %142 : vector<8x32xf32>
    %cst_48 = arith.constant 9.99999974E-6 : f32
    %144 = vector.broadcast %cst_48 : f32 to vector<8x1xf32>
    %145 = arith.addf %141, %144 : vector<8x1xf32>
    %146 = math.rsqrt %145 : vector<8x1xf32>
    %147 = vector.broadcast %146 : vector<8x1xf32> to vector<8x32xf32>
    %148 = arith.mulf %143, %147 : vector<8x32xf32>
    %149 = vector.broadcast %129 : vector<1x32xf32> to vector<8x32xf32>
    %150 = arith.mulf %148, %149 : vector<8x32xf32>
    %151 = vector.broadcast %130 : vector<1x32xf32> to vector<8x32xf32>
    %152 = arith.addf %150, %151 : vector<8x32xf32>
    %153 = arith.truncf %152 : vector<8x32xf32> to vector<8x32xbf16>
    %c0_49 = arith.constant 0 : index
    %c0_50 = arith.constant 0 : index
    %154 = vector.load %arg11[%c0_49, %c0_50] : memref<32x32xbf16, #tpu.memory_space<vmem>>, vector<32x32xbf16>
    %cst_51 = arith.constant dense<0.000000e+00> : vector<8x32xf32>
    %155 = tpu.matmul %153, %154, %cst_51 {dimension_numbers = #tpu.dot_dimension_numbers<[1], [0], [0], [1], [0, 0, 1, 1], [], []>} : vector<8x32xbf16>, vector<32x32xbf16>, vector<8x32xf32> -> vector<8x32xf32>
    %c0_52 = arith.constant 0 : index
    %c0_53 = arith.constant 0 : index
    %156 = vector.load %arg12[%c0_52, %c0_53] : memref<1x32xf32, #tpu.memory_space<vmem>>, vector<1x32xf32>
    %157 = vector.broadcast %156 : vector<1x32xf32> to vector<8x32xf32>
    %158 = arith.addf %155, %157 : vector<8x32xf32>
    %cst_54 = arith.constant 0.000000e+00 : f32
    %159 = vector.broadcast %cst_54 : f32 to vector<8x32xf32>
    %160 = arith.maximumf %158, %159 : vector<8x32xf32>
    %161 = arith.truncf %160 : vector<8x32xf32> to vector<8x32xbf16>
    %c0_55 = arith.constant 0 : index
    %c0_56 = arith.constant 0 : index
    %162 = vector.load %arg13[%c0_55, %c0_56] : memref<32x32xbf16, #tpu.memory_space<vmem>>, vector<32x32xbf16>
    %cst_57 = arith.constant dense<0.000000e+00> : vector<8x32xf32>
    %163 = tpu.matmul %161, %162, %cst_57 {dimension_numbers = #tpu.dot_dimension_numbers<[1], [0], [0], [1], [0, 0, 1, 1], [], []>} : vector<8x32xbf16>, vector<32x32xbf16>, vector<8x32xf32> -> vector<8x32xf32>
    %c0_58 = arith.constant 0 : index
    %c0_59 = arith.constant 0 : index
    %164 = vector.load %arg14[%c0_58, %c0_59] : memref<1x32xf32, #tpu.memory_space<vmem>>, vector<1x32xf32>
    %165 = vector.broadcast %164 : vector<1x32xf32> to vector<8x32xf32>
    %166 = arith.addf %163, %165 : vector<8x32xf32>
    %167 = arith.addf %166, %152 : vector<8x32xf32>
    %c0_60 = arith.constant 0 : index
    %c0_61 = arith.constant 0 : index
    %168 = vector.load %arg15[%c0_60, %c0_61] : memref<8x32xf32, #tpu.memory_space<vmem>>, vector<8x32xf32>
    tpu.vector_store %arg15[%c0_60, %c0_61], %167 {strides = array<i32>} : memref<8x32xf32, #tpu.memory_space<vmem>>, vector<8x32xf32>,
    return
  }
  func.func @transform_0(%arg0: i32) -> (i32, i32) {
    %c0_i32 = arith.constant 0 : i32
    %c0_i32_0 = arith.constant 0 : i32
    return %arg0, %c0_i32 : i32, i32
  }
  func.func @transform_1(%arg0: i32) -> (i32, i32) {
    %c0_i32 = arith.constant 0 : i32
    %c0_i32_0 = arith.constant 0 : i32
    %c0_i32_1 = arith.constant 0 : i32
    return %c0_i32, %c0_i32_0 : i32, i32
  }
  func.func @transform_2(%arg0: i32) -> (i32, i32) {
    %c0_i32 = arith.constant 0 : i32
    %c0_i32_0 = arith.constant 0 : i32
    %c0_i32_1 = arith.constant 0 : i32
    return %c0_i32, %c0_i32_0 : i32, i32
  }
  func.func @transform_3(%arg0: i32) -> (i32, i32) {
    %c0_i32 = arith.constant 0 : i32
    %c0_i32_0 = arith.constant 0 : i32
    %c0_i32_1 = arith.constant 0 : i32
    return %c0_i32, %c0_i32_0 : i32, i32
  }
  func.func @transform_4(%arg0: i32) -> (i32, i32) {
    %c0_i32 = arith.constant 0 : i32
    %c0_i32_0 = arith.constant 0 : i32
    %c0_i32_1 = arith.constant 0 : i32
    return %c0_i32, %c0_i32_0 : i32, i32
  }
  func.func @transform_5(%arg0: i32) -> (i32, i32) {
    %c0_i32 = arith.constant 0 : i32
    %c0_i32_0 = arith.constant 0 : i32
    %c0_i32_1 = arith.constant 0 : i32
    return %c0_i32, %c0_i32_0 : i32, i32
  }
  func.func @transform_6(%arg0: i32) -> (i32, i32) {
    %c0_i32 = arith.constant 0 : i32
    %c0_i32_0 = arith.constant 0 : i32
    %c0_i32_1 = arith.constant 0 : i32
    return %c0_i32, %c0_i32_0 : i32, i32
  }
  func.func @transform_7(%arg0: i32) -> (i32, i32) {
    %c0_i32 = arith.constant 0 : i32
    %c0_i32_0 = arith.constant 0 : i32
    %c0_i32_1 = arith.constant 0 : i32
    return %c0_i32, %c0_i32_0 : i32, i32
  }
  func.func @transform_8(%arg0: i32) -> (i32, i32) {
    %c0_i32 = arith.constant 0 : i32
    %c0_i32_0 = arith.constant 0 : i32
    %c0_i32_1 = arith.constant 0 : i32
    return %c0_i32, %c0_i32_0 : i32, i32
  }
  func.func @transform_9(%arg0: i32) -> (i32, i32) {
    %c0_i32 = arith.constant 0 : i32
    %c0_i32_0 = arith.constant 0 : i32
    %c0_i32_1 = arith.constant 0 : i32
    return %c0_i32, %c0_i32_0 : i32, i32
  }
  func.func @transform_10(%arg0: i32) -> (i32, i32) {
    %c0_i32 = arith.constant 0 : i32
    %c0_i32_0 = arith.constant 0 : i32
    %c0_i32_1 = arith.constant 0 : i32
    return %c0_i32, %c0_i32_0 : i32, i32
  }
  func.func @transform_11(%arg0: i32) -> (i32, i32) {
    %c0_i32 = arith.constant 0 : i32
    %c0_i32_0 = arith.constant 0 : i32
    %c0_i32_1 = arith.constant 0 : i32
    return %c0_i32, %c0_i32_0 : i32, i32
  }
  func.func @transform_12(%arg0: i32) -> (i32, i32) {
    %c0_i32 = arith.constant 0 : i32
    %c0_i32_0 = arith.constant 0 : i32
    %c0_i32_1 = arith.constant 0 : i32
    return %c0_i32, %c0_i32_0 : i32, i32
  }
  func.func @transform_13(%arg0: i32) -> (i32, i32) {
    %c0_i32 = arith.constant 0 : i32
    %c0_i32_0 = arith.constant 0 : i32
    %c0_i32_1 = arith.constant 0 : i32
    return %c0_i32, %c0_i32_0 : i32, i32
  }
  func.func @transform_14(%arg0: i32) -> (i32, i32) {
    %c0_i32 = arith.constant 0 : i32
    %c0_i32_0 = arith.constant 0 : i32
    return %arg0, %c0_i32 : i32, i32
  }
}

</mosaic_0001>

<llo_original>
// kernel: tpu_custom_call.1
$region0: #{tpu_custom_call.1}
  #allocation0 [shape = 'u32[]', space=smem, size = 0x4, offset = 0x4, fixed_abs, tag = 'smem constant byte address 0x4 - core index']
  #allocation1 [shape = 'u32[72,128]{1,0:T(1,128)}', space=vmem, size = 0x9000, scoped, tag = 'internal scratch']
  %s0 = inlined_call_operand.hbm [shape: f32[16,32], index: 0, kind: input, shape index: {}]
  %s1 = inlined_call_operand.hbm [shape: f32[8,8], index: 1, kind: input, shape index: {}]
  %s2 = inlined_call_operand.vmem [shape: f32[1,32], index: 2, kind: input, shape index: {}]
  %s3 = inlined_call_operand.vmem [shape: f32[1,32], index: 3, kind: input, shape index: {}]
  %s4 = inlined_call_operand.hbm [shape: bf16[32,96], index: 4, kind: input, shape index: {}]
  %s5 = inlined_call_operand.vmem [shape: f32[1,96], index: 5, kind: input, shape index: {}]
  %s6 = inlined_call_operand.hbm [shape: bf16[32,32], index: 6, kind: input, shape index: {}]
  %s7 = inlined_call_operand.vmem [shape: f32[1,32], index: 7, kind: input, shape index: {}]
  %s8 = inlined_call_operand.vmem [shape: f32[1,32], index: 8, kind: input, shape index: {}]
  %s9 = inlined_call_operand.vmem [shape: f32[1,32], index: 9, kind: input, shape index: {}]
  %s10 = inlined_call_operand.hbm [shape: bf16[32,32], index: 10, kind: input, shape index: {}]
  %s11 = inlined_call_operand.vmem [shape: f32[1,32], index: 11, kind: input, shape index: {}]
  %s12 = inlined_call_operand.hbm [shape: bf16[32,32], index: 12, kind: input, shape index: {}]
  %s13 = inlined_call_operand.vmem [shape: f32[1,32], index: 13, kind: input, shape index: {}]
  %s14 = inlined_call_operand.hbm [shape: f32[16,32], index: 14, kind: output, shape index: {}]
  %s15 = sld [smem:[#allocation0]]
  $region113: #{tpu_custom_call.1} parent=0
    _
  %s17 = ssub.s32 1, %s15
  %s18 = scalar_select 0, %s17, %s15
  $region1: #{tpu_custom_call.1} parent=0
    #allocation2 [shape = 'u8[8192]{0}', space=vmem, size = 0x2000, scoped, tag = 'input window, operand 0']
    #allocation3 [shape = 's32[2]{0}', space=sflag, size = 0x8, scoped, tag = 'scoped memory for tpu_custom_call.1']
    #allocation4 [shape = 's32[2]{0}', space=sflag, size = 0x8, scoped, tag = 'scoped memory for tpu_custom_call.1']
    #allocation5 [shape = 'u8[4096]{0}', space=vmem, size = 0x1000, scoped, tag = 'input window, operand 1, single buffered']
    #allocation6 [shape = 's32[1]{0}', space=sflag, size = 0x4, scoped, tag = 'scoped memory for tpu_custom_call.1']
    #allocation7 [shape = 'u8[8192]{0}', space=vmem, size = 0x2000, scoped, tag = 'input window, operand 4, single buffered']
    #allocation8 [shape = 'u8[8192]{0}', space=vmem, size = 0x2000, scoped, tag = 'input window, operand 6, single buffered']
    #allocation9 [shape = 's32[1]{0}', space=sflag, size = 0x4, scoped, tag = 'scoped memory for tpu_custom_call.1']
    #allocation10 [shape = 'u8[8192]{0}', space=vmem, size = 0x2000, scoped, tag = 'input window, operand 10, single buffered']
    #allocation11 [shape = 'u8[8192]{0}', space=vmem, size = 0x2000, scoped, tag = 'input window, operand 12, single buffered']
    #allocation12 [shape = 's32[1]{0}', space=sflag, size = 0x4, scoped, tag = 'scoped memory for tpu_custom_call.1']
    #allocation13 [shape = 'u8[8192]{0}', space=vmem, size = 0x2000, scoped, tag = 'output window, operand 0']
    %19 = vsyncpa [#allocation3], 0
    %s20 = scalar_lea.sflag [#allocation3], 1
    %21 = vsyncpa %s20, 0
    %22 = vsyncpa [#allocation6], 0
    %23 = vsyncpa [#allocation9], 0
    %24 = vsyncpa [#allocation12], 0
    %25 = vsyncpa [#allocation4], 0
    %s26 = scalar_lea.sflag [#allocation4], 1
    %27 = vsyncpa %s26, 0
    loop: start=0, step=1, limit=4
    $region2: #{tpu_custom_call.1} parent=1 // loop_pre_header
      _
    $region3: #{tpu_custom_call.1} parent=1 // loop_header
      %s29 = sphi 0, %s33
      %p30 = scmp.ge.s32.totalorder %s29, 4
      %s39 = sphi 0, %s41
      %s42 = sphi 0, %s39
      %s43 = sphi 0, %s42
      %s59 = sphi 0, %s43
      %s63 = sphi 0, %s63
      %s65 = sphi 0, %s63
      %s66 = sphi 0, %s65
      %s80 = sphi 0, %s66
      %s84 = sphi 0, %s84
      %s86 = sphi 0, %s84
      %s87 = sphi 0, %s86
      %s101 = sphi 0, %s87
      %s105 = sphi 0, %s105
      %s107 = sphi 0, %s105
      %s108 = sphi 0, %s107
      %s122 = sphi 0, %s108
      %s126 = sphi 0, %s126
      %s128 = sphi 0, %s126
      %s129 = sphi 0, %s128
      %s143 = sphi 0, %s129
      %s147 = sphi 0, %s147
      %s149 = sphi 0, %s147
      %s150 = sphi 0, %s149
      %s164 = sphi 0, %s150
      %s168 = sphi 0, %s168
      %s170 = sphi 0, %s168
      %s171 = sphi 0, %s170
      %s185 = sphi 0, %s171
      %s189 = sphi 0, %s189
      %s191 = sphi 0, %s189
      %s192 = sphi 0, %s191
      %s206 = sphi 0, %s192
      %s210 = sphi 0, %s210
      %s212 = sphi 0, %s210
      %s213 = sphi 0, %s212
      %s227 = sphi 0, %s213
      %s231 = sphi 0, %s231
      %s233 = sphi 0, %s231
      %s234 = sphi 0, %s233
      %s248 = sphi 0, %s234
      %s252 = sphi 0, %s252
      %s254 = sphi 0, %s252
      %s255 = sphi 0, %s254
      %s269 = sphi 0, %s255
      %s273 = sphi 0, %s273
      %s275 = sphi 0, %s273
      %s276 = sphi 0, %s275
      %s290 = sphi 0, %s276
      %s294 = sphi 0, %s294
      %s296 = sphi 0, %s294
      %s297 = sphi 0, %s296
      %s311 = sphi 0, %s297
      %s315 = sphi 0, %s315
      %s317 = sphi 0, %s315
      %s318 = sphi 0, %s317
      %s332 = sphi 0, %s318
      %s338 = sphi 0, %s340
      %s341 = sphi 0, %s338
      %s342 = sphi 0, %s341
      %s358 = sphi 0, %s342
    $region4: #{tpu_custom_call.1} parent=1 // loop_header_branch
      %32 = sbr.rel (%p30) target = $region8
    $region5: #{tpu_custom_call.1} parent=1 // loop_body
      %s34 = ssub.s32 %s29, 1
      %s35 = ssub.s32 %s29, 2
      %s36 = sadd.s32 %s29, 1
      %s37 = ssub.s32 %s29, %s36
      %p38 = scmp.eq.s32.totalorder %s37, 0
      %s40 = sadd.s32 %s39, 1
      %s41 = scalar_select %p38, %s39, %s40
      %p44 = pneg %p38
      %p45 = scmp.eq.s32.totalorder %s29, 1
      %p46 = por %p44, %p45
      %p47 = scmp.ne.s32.totalorder %s39, %s42
      %p48 = scmp.eq.s32.totalorder %s29, 0
      %p49 = por %p47, %p48
      %p50 = scmp.ne.s32.totalorder %s39, %s42
      %p51 = scmp.eq.s32.totalorder %s34, 1
      %p52 = por %p50, %p51
      %p53 = scmp.ne.s32.totalorder %s42, %s43
      %p54 = scmp.eq.s32.totalorder %s34, 0
      %p55 = por %p53, %p54
      %p56 = scmp.ne.s32.totalorder %s42, %s43
      %p57 = scmp.eq.s32.totalorder %s35, 1
      %p58 = por %p56, %p57
      %p60 = scmp.ne.s32.totalorder %s43, %s59
      %p61 = scmp.eq.s32.totalorder %s35, 0
      %p62 = por %p60, %p61
      %s64 = sadd.s32 %s63, 1
      %p67 = scmp.eq.s32.totalorder %s29, 1
      %p68 = scmp.ne.s32.totalorder %s63, %s65
      %p69 = scmp.eq.s32.totalorder %s29, 0
      %p70 = por %p68, %p69
      %p71 = scmp.ne.s32.totalorder %s63, %s65
      %p72 = scmp.eq.s32.totalorder %s34, 1
      %p73 = por %p71, %p72
      %p74 = scmp.ne.s32.totalorder %s65, %s66
      %p75 = scmp.eq.s32.totalorder %s34, 0
      %p76 = por %p74, %p75
      %p77 = scmp.ne.s32.totalorder %s65, %s66
      %p78 = scmp.eq.s32.totalorder %s35, 1
      %p79 = por %p77, %p78
      %p81 = scmp.ne.s32.totalorder %s66, %s80
      %p82 = scmp.eq.s32.totalorder %s35, 0
      %p83 = por %p81, %p82
      %s85 = sadd.s32 %s84, 1
      %p88 = scmp.eq.s32.totalorder %s29, 1
      %p89 = scmp.ne.s32.totalorder %s84, %s86
      %p90 = scmp.eq.s32.totalorder %s29, 0
      %p91 = por %p89, %p90
      %p92 = scmp.ne.s32.totalorder %s84, %s86
      %p93 = scmp.eq.s32.totalorder %s34, 1
      %p94 = por %p92, %p93
      %p95 = scmp.ne.s32.totalorder %s86, %s87
      %p96 = scmp.eq.s32.totalorder %s34, 0
      %p97 = por %p95, %p96
      %p98 = scmp.ne.s32.totalorder %s86, %s87
      %p99 = scmp.eq.s32.totalorder %s35, 1
      %p100 = por %p98, %p99
      %p102 = scmp.ne.s32.totalorder %s87, %s101
      %p103 = scmp.eq.s32.totalorder %s35, 0
      %p104 = por %p102, %p103
      %s106 = sadd.s32 %s105, 1
      %p109 = scmp.eq.s32.totalorder %s29, 1
      %p110 = scmp.ne.s32.totalorder %s105, %s107
      %p111 = scmp.eq.s32.totalorder %s29, 0
      %p112 = por %p110, %p111
      %p113 = scmp.ne.s32.totalorder %s105, %s107
      %p114 = scmp.eq.s32.totalorder %s34, 1
      %p115 = por %p113, %p114
      %p116 = scmp.ne.s32.totalorder %s107, %s108
      %p117 = scmp.eq.s32.totalorder %s34, 0
      %p118 = por %p116, %p117
      %p119 = scmp.ne.s32.totalorder %s107, %s108
      %p120 = scmp.eq.s32.totalorder %s35, 1
      %p121 = por %p119, %p120
      %p123 = scmp.ne.s32.totalorder %s108, %s122
      %p124 = scmp.eq.s32.totalorder %s35, 0
      %p125 = por %p123, %p124
      %s127 = sadd.s32 %s126, 1
      %p130 = scmp.eq.s32.totalorder %s29, 1
      %p131 = scmp.ne.s32.totalorder %s126, %s128
      %p132 = scmp.eq.s32.totalorder %s29, 0
      %p133 = por %p131, %p132
      %p134 = scmp.ne.s32.totalorder %s126, %s128
      %p135 = scmp.eq.s32.totalorder %s34, 1
      %p136 = por %p134, %p135
      %p137 = scmp.ne.s32.totalorder %s128, %s129
      %p138 = scmp.eq.s32.totalorder %s34, 0
      %p139 = por %p137, %p138
      %p140 = scmp.ne.s32.totalorder %s128, %s129
      %p141 = scmp.eq.s32.totalorder %s35, 1
      %p142 = por %p140, %p141
      %p144 = scmp.ne.s32.totalorder %s129, %s143
      %p145 = scmp.eq.s32.totalorder %s35, 0
      %p146 = por %p144, %p145
      %s148 = sadd.s32 %s147, 1
      %p151 = scmp.eq.s32.totalorder %s29, 1
      %p152 = scmp.ne.s32.totalorder %s147, %s149
      %p153 = scmp.eq.s32.totalorder %s29, 0
      %p154 = por %p152, %p153
      %p155 = scmp.ne.s32.totalorder %s147, %s149
      %p156 = scmp.eq.s32.totalorder %s34, 1
      %p157 = por %p155, %p156
      %p158 = scmp.ne.s32.totalorder %s149, %s150
      %p159 = scmp.eq.s32.totalorder %s34, 0
      %p160 = por %p158, %p159
      %p161 = scmp.ne.s32.totalorder %s149, %s150
      %p162 = scmp.eq.s32.totalorder %s35, 1
      %p163 = por %p161, %p162
      %p165 = scmp.ne.s32.totalorder %s150, %s164
      %p166 = scmp.eq.s32.totalorder %s35, 0
      %p167 = por %p165, %p166
      %s169 = sadd.s32 %s168, 1
      %p172 = scmp.eq.s32.totalorder %s29, 1
      %p173 = scmp.ne.s32.totalorder %s168, %s170
      %p174 = scmp.eq.s32.totalorder %s29, 0
      %p175 = por %p173, %p174
      %p176 = scmp.ne.s32.totalorder %s168, %s170
      %p177 = scmp.eq.s32.totalorder %s34, 1
      %p178 = por %p176, %p177
      %p179 = scmp.ne.s32.totalorder %s170, %s171
      %p180 = scmp.eq.s32.totalorder %s34, 0
      %p181 = por %p179, %p180
      %p182 = scmp.ne.s32.totalorder %s170, %s171
      %p183 = scmp.eq.s32.totalorder %s35, 1
      %p184 = por %p182, %p183
      %p186 = scmp.ne.s32.totalorder %s171, %s185
      %p187 = scmp.eq.s32.totalorder %s35, 0
      %p188 = por %p186, %p187
      %s190 = sadd.s32 %s189, 1
      %p193 = scmp.eq.s32.totalorder %s29, 1
      %p194 = scmp.ne.s32.totalorder %s189, %s191
      %p195 = scmp.eq.s32.totalorder %s29, 0
      %p196 = por %p194, %p195
      %p197 = scmp.ne.s32.totalorder %s189, %s191
      %p198 = scmp.eq.s32.totalorder %s34, 1
      %p199 = por %p197, %p198
      %p200 = scmp.ne.s32.totalorder %s191, %s192
      %p201 = scmp.eq.s32.totalorder %s34, 0
      %p202 = por %p200, %p201
      %p203 = scmp.ne.s32.totalorder %s191, %s192
      %p204 = scmp.eq.s32.totalorder %s35, 1
      %p205 = por %p203, %p204
      %p207 = scmp.ne.s32.totalorder %s192, %s206
      %p208 = scmp.eq.s32.totalorder %s35, 0
      %p209 = por %p207, %p208
      %s211 = sadd.s32 %s210, 1
      %p214 = scmp.eq.s32.totalorder %s29, 1
      %p215 = scmp.ne.s32.totalorder %s210, %s212
      %p216 = scmp.eq.s32.totalorder %s29, 0
      %p217 = por %p215, %p216
      %p218 = scmp.ne.s32.totalorder %s210, %s212
      %p219 = scmp.eq.s32.totalorder %s34, 1
      %p220 = por %p218, %p219
      %p221 = scmp.ne.s32.totalorder %s212, %s213
      %p222 = scmp.eq.s32.totalorder %s34, 0
      %p223 = por %p221, %p222
      %p224 = scmp.ne.s32.totalorder %s212, %s213
      %p225 = scmp.eq.s32.totalorder %s35, 1
      %p226 = por %p224, %p225
      %p228 = scmp.ne.s32.totalorder %s213, %s227
      %p229 = scmp.eq.s32.totalorder %s35, 0
      %p230 = por %p228, %p229
      %s232 = sadd.s32 %s231, 1
      %p235 = scmp.eq.s32.totalorder %s29, 1
      %p236 = scmp.ne.s32.totalorder %s231, %s233
      %p237 = scmp.eq.s32.totalorder %s29, 0
      %p238 = por %p236, %p237
      %p239 = scmp.ne.s32.totalorder %s231, %s233
      %p240 = scmp.eq.s32.totalorder %s34, 1
      %p241 = por %p239, %p240
      %p242 = scmp.ne.s32.totalorder %s233, %s234
      %p243 = scmp.eq.s32.totalorder %s34, 0
      %p244 = por %p242, %p243
      %p245 = scmp.ne.s32.totalorder %s233, %s234
      %p246 = scmp.eq.s32.totalorder %s35, 1
      %p247 = por %p245, %p246
      %p249 = scmp.ne.s32.totalorder %s234, %s248
      %p250 = scmp.eq.s32.totalorder %s35, 0
      %p251 = por %p249, %p250
      %s253 = sadd.s32 %s252, 1
      %p256 = scmp.eq.s32.totalorder %s29, 1
      %p257 = scmp.ne.s32.totalorder %s252, %s254
      %p258 = scmp.eq.s32.totalorder %s29, 0
      %p259 = por %p257, %p258
      %p260 = scmp.ne.s32.totalorder %s252, %s254
      %p261 = scmp.eq.s32.totalorder %s34, 1
      %p262 = por %p260, %p261
      %p263 = scmp.ne.s32.totalorder %s254, %s255
      %p264 = scmp.eq.s32.totalorder %s34, 0
      %p265 = por %p263, %p264
      %p266 = scmp.ne.s32.totalorder %s254, %s255
      %p267 = scmp.eq.s32.totalorder %s35, 1
      %p268 = por %p266, %p267
      %p270 = scmp.ne.s32.totalorder %s255, %s269
      %p271 = scmp.eq.s32.totalorder %s35, 0
      %p272 = por %p270, %p271
      %s274 = sadd.s32 %s273, 1
      %p277 = scmp.eq.s32.totalorder %s29, 1
      %p278 = scmp.ne.s32.totalorder %s273, %s275
      %p279 = scmp.eq.s32.totalorder %s29, 0
      %p280 = por %p278, %p279
      %p281 = scmp.ne.s32.totalorder %s273, %s275
      %p282 = scmp.eq.s32.totalorder %s34, 1
      %p283 = por %p281, %p282
      %p284 = scmp.ne.s32.totalorder %s275, %s276
      %p285 = scmp.eq.s32.totalorder %s34, 0
      %p286 = por %p284, %p285
      %p287 = scmp.ne.s32.totalorder %s275, %s276
      %p288 = scmp.eq.s32.totalorder %s35, 1
      %p289 = por %p287, %p288
      %p291 = scmp.ne.s32.totalorder %s276, %s290
      %p292 = scmp.eq.s32.totalorder %s35, 0
      %p293 = por %p291, %p292
      %s295 = sadd.s32 %s294, 1
      %p298 = scmp.eq.s32.totalorder %s29, 1
      %p299 = scmp.ne.s32.totalorder %s294, %s296
      %p300 = scmp.eq.s32.totalorder %s29, 0
      %p301 = por %p299, %p300
      %p302 = scmp.ne.s32.totalorder %s294, %s296
      %p303 = scmp.eq.s32.totalorder %s34, 1
      %p304 = por %p302, %p303
      %p305 = scmp.ne.s32.totalorder %s296, %s297
      %p306 = scmp.eq.s32.totalorder %s34, 0
      %p307 = por %p305, %p306
      %p308 = scmp.ne.s32.totalorder %s296, %s297
      %p309 = scmp.eq.s32.totalorder %s35, 1
      %p310 = por %p308, %p309
      %p312 = scmp.ne.s32.totalorder %s297, %s311
      %p313 = scmp.eq.s32.totalorder %s35, 0
      %p314 = por %p312, %p313
      %s316 = sadd.s32 %s315, 1
      %p319 = scmp.eq.s32.totalorder %s29, 1
      %p320 = scmp.ne.s32.totalorder %s315, %s317
      %p321 = scmp.eq.s32.totalorder %s29, 0
      %p322 = por %p320, %p321
      %p323 = scmp.ne.s32.totalorder %s315, %s317
      %p324 = scmp.eq.s32.totalorder %s34, 1
      %p325 = por %p323, %p324
      %p326 = scmp.ne.s32.totalorder %s317, %s318
      %p327 = scmp.eq.s32.totalorder %s34, 0
      %p328 = por %p326, %p327
      %p329 = scmp.ne.s32.totalorder %s317, %s318
      %p330 = scmp.eq.s32.totalorder %s35, 1
      %p331 = por %p329, %p330
      %p333 = scmp.ne.s32.totalorder %s318, %s332
      %p334 = scmp.eq.s32.totalorder %s35, 0
      %p335 = por %p333, %p334
      %s336 = ssub.s32 %s29, %s36
      %p337 = scmp.eq.s32.totalorder %s336, 0
      %s339 = sadd.s32 %s338, 1
      %s340 = scalar_select %p337, %s338, %s339
      %p343 = pneg %p337
      %p344 = scmp.eq.s32.totalorder %s29, 1
      %p345 = por %p343, %p344
      %p346 = scmp.ne.s32.totalorder %s338, %s341
      %p347 = scmp.eq.s32.totalorder %s29, 0
      %p348 = por %p346, %p347
      %p349 = scmp.ne.s32.totalorder %s338, %s341
      %p350 = scmp.eq.s32.totalorder %s34, 1
      %p351 = por %p349, %p350
      %p352 = scmp.ne.s32.totalorder %s341, %s342
      %p353 = scmp.eq.s32.totalorder %s34, 0
      %p354 = por %p352, %p353
      %p355 = scmp.ne.s32.totalorder %s341, %s342
      %p356 = scmp.eq.s32.totalorder %s35, 1
      %p357 = por %p355, %p356
      %p359 = scmp.ne.s32.totalorder %s342, %s358
      %p360 = scmp.eq.s32.totalorder %s35, 0
      %p361 = por %p359, %p360
      %p362 = scmp.le.s32.totalorder 1, %s29
      %p363 = scmp.lt.s32.totalorder %s29, 3
      %p364 = pnand %p362, %p363
      %p365 = pneg %p364
      // Predicated region
      $region9: #{tpu_custom_call.1} parent=5 // pred_check
        _
      $region10: #{tpu_custom_call.1} parent=5 // pred_check_branch
        %367 = sbr.rel (%p364) target = $region12
      $region11: #{tpu_custom_call.1} parent=5 // pred_region
        %s368 = ssub.s32 %s29, 1
        // Predicated region
        $region13: #{tpu_custom_call.1} parent=11 // pred_check
          %p369 = pneg %p76
        $region14: #{tpu_custom_call.1} parent=11 // pred_check_branch
          %371 = sbr.rel (%p369) target = $region16
        $region15: #{tpu_custom_call.1} parent=11 // pred_region
          %373 = vsyncadd [#allocation6], 0
          %s375 = sshll.u32 %s1, 4
          %s376 = int_to_ptr.hbm [resolvable:$true] %s375
          %s377 = sshll.u32 [#allocation5], 4
          %s378 = int_to_ptr.vmem [resolvable:$true] %s377
          %380 = dma.hbm_to_vmem [thread:$0]  %s376, 128, %s378, [#allocation6]
        $region16: #{tpu_custom_call.1} parent=11 // pred_fallthru
          _
        // Predicated region
        $region17: #{tpu_custom_call.1} parent=11 // pred_check
          %p381 = pneg %p97
        $region18: #{tpu_custom_call.1} parent=11 // pred_check_branch
          %383 = sbr.rel (%p381) target = $region20
        $region19: #{tpu_custom_call.1} parent=11 // pred_region
          _
        $region20: #{tpu_custom_call.1} parent=11 // pred_fallthru
          _
        // Predicated region
        $region21: #{tpu_custom_call.1} parent=11 // pred_check
          %p384 = pneg %p118
        $region22: #{tpu_custom_call.1} parent=11 // pred_check_branch
          %386 = sbr.rel (%p384) target = $region24
        $region23: #{tpu_custom_call.1} parent=11 // pred_region
          _
        $region24: #{tpu_custom_call.1} parent=11 // pred_fallthru
          _
        // Predicated region
        $region25: #{tpu_custom_call.1} parent=11 // pred_check
          %p387 = pneg %p139
        $region26: #{tpu_custom_call.1} parent=11 // pred_check_branch
          %389 = sbr.rel (%p387) target = $region28
        $region27: #{tpu_custom_call.1} parent=11 // pred_region
          %391 = vsyncadd [#allocation6], 0
          %s392 = sshll.u32 %s4, 4
          %s393 = int_to_ptr.hbm [resolvable:$true] %s392
          %s394 = sshll.u32 [#allocation7], 4
          %s395 = int_to_ptr.vmem [resolvable:$true] %s394
          %400 = dma.hbm_to_vmem [thread:$0]  %s393, 256, %s395, [#allocation6], 64, 64, 4
        $region28: #{tpu_custom_call.1} parent=11 // pred_fallthru
          _
        // Predicated region
        $region29: #{tpu_custom_call.1} parent=11 // pred_check
          %p401 = pneg %p160
        $region30: #{tpu_custom_call.1} parent=11 // pred_check_branch
          %403 = sbr.rel (%p401) target = $region32
        $region31: #{tpu_custom_call.1} parent=11 // pred_region
          _
        $region32: #{tpu_custom_call.1} parent=11 // pred_fallthru
          _
        // Predicated region
        $region33: #{tpu_custom_call.1} parent=11 // pred_check
          %p404 = pneg %p181
        $region34: #{tpu_custom_call.1} parent=11 // pred_check_branch
          %406 = sbr.rel (%p404) target = $region36
        $region35: #{tpu_custom_call.1} parent=11 // pred_region
          %408 = vsyncadd [#allocation9], 0
          %s409 = sshll.u32 %s6, 4
          %s410 = int_to_ptr.hbm [resolvable:$true] %s409
          %s411 = sshll.u32 [#allocation8], 4
          %s412 = int_to_ptr.vmem [resolvable:$true] %s411
          %417 = dma.hbm_to_vmem [thread:$0]  %s410, 256, %s412, [#allocation9], 64, 64, 4
        $region36: #{tpu_custom_call.1} parent=11 // pred_fallthru
          _
        // Predicated region
        $region37: #{tpu_custom_call.1} parent=11 // pred_check
          %p418 = pneg %p202
        $region38: #{tpu_custom_call.1} parent=11 // pred_check_branch
          %420 = sbr.rel (%p418) target = $region40
        $region39: #{tpu_custom_call.1} parent=11 // pred_region
          _
        $region40: #{tpu_custom_call.1} parent=11 // pred_fallthru
          _
        // Predicated region
        $region41: #{tpu_custom_call.1} parent=11 // pred_check
          %p421 = pneg %p223
        $region42: #{tpu_custom_call.1} parent=11 // pred_check_branch
          %423 = sbr.rel (%p421) target = $region44
        $region43: #{tpu_custom_call.1} parent=11 // pred_region
          _
        $region44: #{tpu_custom_call.1} parent=11 // pred_fallthru
          _
        // Predicated region
        $region45: #{tpu_custom_call.1} parent=11 // pred_check
          %p424 = pneg %p244
        $region46: #{tpu_custom_call.1} parent=11 // pred_check_branch
          %426 = sbr.rel (%p424) target = $region48
        $region47: #{tpu_custom_call.1} parent=11 // pred_region
          _
        $region48: #{tpu_custom_call.1} parent=11 // pred_fallthru
          _
        // Predicated region
        $region49: #{tpu_custom_call.1} parent=11 // pred_check
          %p427 = pneg %p265
        $region50: #{tpu_custom_call.1} parent=11 // pred_check_branch
          %429 = sbr.rel (%p427) target = $region52
        $region51: #{tpu_custom_call.1} parent=11 // pred_region
          %431 = vsyncadd [#allocation9], 0
          %s432 = sshll.u32 %s10, 4
          %s433 = int_to_ptr.hbm [resolvable:$true] %s432
          %s434 = sshll.u32 [#allocation10], 4
          %s435 = int_to_ptr.vmem [resolvable:$true] %s434
          %440 = dma.hbm_to_vmem [thread:$0]  %s433, 256, %s435, [#allocation9], 64, 64, 4
        $region52: #{tpu_custom_call.1} parent=11 // pred_fallthru
          _
        // Predicated region
        $region53: #{tpu_custom_call.1} parent=11 // pred_check
          %p441 = pneg %p286
        $region54: #{tpu_custom_call.1} parent=11 // pred_check_branch
          %443 = sbr.rel (%p441) target = $region56
        $region55: #{tpu_custom_call.1} parent=11 // pred_region
          _
        $region56: #{tpu_custom_call.1} parent=11 // pred_fallthru
          _
        // Predicated region
        $region57: #{tpu_custom_call.1} parent=11 // pred_check
          %p444 = pneg %p307
        $region58: #{tpu_custom_call.1} parent=11 // pred_check_branch
          %446 = sbr.rel (%p444) target = $region60
        $region59: #{tpu_custom_call.1} parent=11 // pred_region
          %448 = vsyncadd [#allocation12], 0
          %s449 = sshll.u32 %s12, 4
          %s450 = int_to_ptr.hbm [resolvable:$true] %s449
          %s451 = sshll.u32 [#allocation11], 4
          %s452 = int_to_ptr.vmem [resolvable:$true] %s451
          %457 = dma.hbm_to_vmem [thread:$0]  %s450, 256, %s452, [#allocation12], 64, 64, 4
        $region60: #{tpu_custom_call.1} parent=11 // pred_fallthru
          _
        // Predicated region
        $region61: #{tpu_custom_call.1} parent=11 // pred_check
          %p458 = pneg %p328
        $region62: #{tpu_custom_call.1} parent=11 // pred_check_branch
          %460 = sbr.rel (%p458) target = $region64
        $region63: #{tpu_custom_call.1} parent=11 // pred_region
          _
        $region64: #{tpu_custom_call.1} parent=11 // pred_fallthru
          _
      $region12: #{tpu_custom_call.1} parent=5 // pred_fallthru
        _
      %p461 = scmp.lt.s32.totalorder %s29, 2
      // Predicated region
      $region65: #{tpu_custom_call.1} parent=5 // pred_check
        %p462 = pneg %p461
      $region66: #{tpu_custom_call.1} parent=5 // pred_check_branch
        %464 = sbr.rel (%p462) target = $region68
      $region67: #{tpu_custom_call.1} parent=5 // pred_region
        // Predicated region
        $region69: #{tpu_custom_call.1} parent=67 // pred_check
          %p465 = pneg %p49
        $region70: #{tpu_custom_call.1} parent=67 // pred_check_branch
          %467 = sbr.rel (%p465) target = $region72
        $region71: #{tpu_custom_call.1} parent=67 // pred_region
          %s468 = sand.u32 %s39, 1
          %s469 = scalar_lea.sflag [#allocation3], %s468
          %s470 = sand.u32 %s39, 1
          %s471 = smul.addr %s470, 8
          %s472 = scalar_lea.vmem [#allocation2], %s471
          %474 = vsyncadd %s469, 0
          %s475 = smul.addr %s29, 8
          %s476 = scalar_lea.hbm %s0, %s475
          %s478 = sshll.u32 %s476, 4
          %s479 = int_to_ptr.hbm [resolvable:$true] %s478
          %s480 = sshll.u32 %s472, 4
          %s481 = int_to_ptr.vmem [resolvable:$true] %s480
          %483 = dma.hbm_to_vmem [thread:$0]  %s479, 128, %s481, %s469
        $region72: #{tpu_custom_call.1} parent=67 // pred_fallthru
          _
      $region68: #{tpu_custom_call.1} parent=5 // pred_fallthru
        _
      %p484 = scmp.le.s32.totalorder 1, %s29
      %p485 = scmp.lt.s32.totalorder %s29, 3
      %p486 = pnand %p484, %p485
      %p487 = pneg %p486
      // Predicated region
      $region73: #{tpu_custom_call.1} parent=5 // pred_check
        _
      $region74: #{tpu_custom_call.1} parent=5 // pred_check_branch
        %489 = sbr.rel (%p486) target = $region76
      $region75: #{tpu_custom_call.1} parent=5 // pred_region
        %s490 = ssub.s32 %s29, 1
        %s491 = sand.u32 %s42, 1
        %s492 = scalar_lea.sflag [#allocation3], %s491
        %s493 = sand.u32 %s42, 1
        %s494 = smul.addr %s493, 8
        %s495 = scalar_lea.vmem [#allocation2], %s494
        // Predicated region
        $region77: #{tpu_custom_call.1} parent=75 // pred_check
          %p496 = pneg %p55
        $region78: #{tpu_custom_call.1} parent=75 // pred_check_branch
          %498 = sbr.rel (%p496) target = $region80
        $region79: #{tpu_custom_call.1} parent=75 // pred_region
          %500 = dma.done %s492, 128
        $region80: #{tpu_custom_call.1} parent=75 // pred_fallthru
          _
        // Predicated region
        $region81: #{tpu_custom_call.1} parent=75 // pred_check
          %p501 = pneg %p76
        $region82: #{tpu_custom_call.1} parent=75 // pred_check_branch
          %503 = sbr.rel (%p501) target = $region84
        $region83: #{tpu_custom_call.1} parent=75 // pred_region
          %505 = dma.done [#allocation6], 128
        $region84: #{tpu_custom_call.1} parent=75 // pred_fallthru
          _
        // Predicated region
        $region85: #{tpu_custom_call.1} parent=75 // pred_check
          %p506 = pneg %p139
        $region86: #{tpu_custom_call.1} parent=75 // pred_check_branch
          %508 = sbr.rel (%p506) target = $region88
        $region87: #{tpu_custom_call.1} parent=75 // pred_region
          %510 = dma.done [#allocation6], 256
        $region88: #{tpu_custom_call.1} parent=75 // pred_fallthru
          _
        // Predicated region
        $region89: #{tpu_custom_call.1} parent=75 // pred_check
          %p511 = pneg %p181
        $region90: #{tpu_custom_call.1} parent=75 // pred_check_branch
          %513 = sbr.rel (%p511) target = $region92
        $region91: #{tpu_custom_call.1} parent=75 // pred_region
          %515 = dma.done [#allocation9], 256
        $region92: #{tpu_custom_call.1} parent=75 // pred_fallthru
          _
        // Predicated region
        $region93: #{tpu_custom_call.1} parent=75 // pred_check
          %p516 = pneg %p265
        $region94: #{tpu_custom_call.1} parent=75 // pred_check_branch
          %518 = sbr.rel (%p516) target = $region96
        $region95: #{tpu_custom_call.1} parent=75 // pred_region
          %520 = dma.done [#allocation9], 256
        $region96: #{tpu_custom_call.1} parent=75 // pred_fallthru
          _
        // Predicated region
        $region97: #{tpu_custom_call.1} parent=75 // pred_check
          %p521 = pneg %p307
        $region98: #{tpu_custom_call.1} parent=75 // pred_check_branch
          %523 = sbr.rel (%p521) target = $region100
        $region99: #{tpu_custom_call.1} parent=75 // pred_region
          %525 = dma.done [#allocation12], 256
        $region100: #{tpu_custom_call.1} parent=75 // pred_fallthru
          _
        %s526 = sand.u32 %s42, 1
        %s527 = scalar_lea.sflag [#allocation3], %s526
        %s528 = sand.u32 %s42, 1
        %s529 = smul.addr %s528, 8
        %s530 = scalar_lea.vmem [#allocation2], %s529
        %p531 = pneg %p55
        %p532 = pneg %p52
        %p533 = pneg %p76
        %p534 = pneg %p73
        %p535 = pneg %p97
        %p536 = pneg %p94
        %p537 = pneg %p118
        %p538 = pneg %p115
        %p539 = pneg %p139
        %p540 = pneg %p136
        %p541 = pneg %p160
        %p542 = pneg %p157
        %p543 = pneg %p181
        %p544 = pneg %p178
        %p545 = pneg %p202
        %p546 = pneg %p199
        %p547 = pneg %p223
        %p548 = pneg %p220
        %p549 = pneg %p244
        %p550 = pneg %p241
        %p551 = pneg %p265
        %p552 = pneg %p262
        %p553 = pneg %p286
        %p554 = pneg %p283
        %p555 = pneg %p307
        %p556 = pneg %p304
        %p557 = pneg %p328
        %p558 = pneg %p325
        %p559 = pneg %p354
        %p560 = pneg %p351
        %s561 = sand.u32 %s341, 1
        %s562 = scalar_lea.sflag [#allocation4], %s561
        %s563 = sand.u32 %s341, 1
        %s564 = smul.addr %s563, 8
        %s565 = scalar_lea.vmem [#allocation13], %s564
        %v567 = vld [vmem:[%s495] sm:$0xff]
        %v568 = vld [vmem:[%s2] sm:$0x1]
        %v569 = vld [vmem:[%s3] sm:$0x1]
        %vm570 = vcmask 261120
        %v571 = vsel %vm570, %v567, 0.0
        %572 = vadd.xlane.f32.xlu0 %v571
        %v573 = vpop.xlane.xlu0 %572
        %v574 = vrcp.pop 32.0
        %v575 = vmul.f32 32.0, %v574
        %v576 = vsub.f32 1.0, %v575
        %v577 = vmul.f32 %v574, %v576
        %v578 = vadd.f32 %v574, %v577
        %vm579 = vweird.f32 %v574
        %v580 = vsel %vm579, %v574, %v578
        %v581 = vmul.f32 %v573, %v580
        %v582 = vmul.f32 %v567, %v567
        %v583 = vsel %vm570, %v582, 0.0
        %584 = vadd.xlane.f32.xlu0 %v583
        %v585 = vpop.xlane.xlu0 %584
        %v586 = vmul.f32 %v585, %v580
        %v587 = vmul.f32 %v581, %v581
        %v588 = vsub.f32 %v586, %v587
        %v589 = vsub.f32 %v567, %v581
        %v590 = vadd.f32 %v588, 1e-05
        %v591 = vrsqrt.pop %v590
        %v592 = vmul.f32 %v591, %v590
        %v593 = vmul.f32 %v592, %v591
        %v594 = vmul.f32 0.5, %v593
        %v595 = vsub.f32 1.5, %v594
        %v596 = vmul.f32 %v591, %v595
        %vm597 = vweird.f32 %v590
        %vm598 = vweird.f32 %v591
        %vm599 = vmor %vm597, %vm598
        %v600 = vsel %vm599, %v591, %v596
        %v601 = vmul.f32 %v589, %v600
        %v603 = vperm.slane %v568, 0
        %v605 = vmul.f32 %v601, %v603
        %v607 = vperm.slane %v569, 0
        %v609 = vadd.f32 %v605, %v607
        %v610 = vpack.c.bf16 %v609, %v609
        %v611 = vld [vmem:[#allocation7] sm:$0xf]
        %v612 = vld [vmem:[#allocation7 + $0x4] sm:$0xf]
        %v613 = vld [vmem:[#allocation7 + $0x8] sm:$0xf]
        %v614 = vld [vmem:[#allocation7 + $0xc] sm:$0xf]
        %v615 = vld [vmem:[%s5] sm:$0x1]
        %v617 = vperm.slane %v615, 0
        %v623 = vunpack.c.l.b16 %v611
        %v624 = vunpack.c.l.b16 %v612
        %v625 = vunpack.c.l.b16 %v613
        %v626 = vunpack.c.l.b16 %v614
        %v627 = vpack.c.b16 %v624, %v623
        %v628 = vpack.c.b16 %v626, %v625
        %v632 = vsel %vm570, %v610, 0
        %634 = vmatpush.bf16.msra.mxu0 0
        %635 = vmatpush.bf16.msra.mxu0 0
        %636 = vmatpush.bf16.msra.mxu0 0
        %637 = vmatpush.bf16.msra.mxu0 0
        %638 = vmatpush.bf16.msra.mxu0 0
        %639 = vmatpush.bf16.msra.mxu0 0
        %640 = vmatpush.bf16.msra.mxu0 %v628
        %641 = vmatpush.bf16.msra.mxu0 %v627
        %642 = vmatmul.bf16.gmra.mxu0 %v632
        %v643 = vpop.f32.mrf.mxu0
        %v644 = vadd.f32 %v617, %v643
        %v645 = vpop.f32.mrf.mxu0
        %646 = vdwg.mxu0
        %v647 = vpack.c.bf16 %v644, %v644
        %v648 = vld [vmem:[#allocation5] sm:$0xff]
        %v649 = vld [vmem:[#allocation8] sm:$0xf]
        %v650 = vld [vmem:[#allocation8 + $0x4] sm:$0xf]
        %v651 = vld [vmem:[#allocation8 + $0x8] sm:$0xf]
        %v652 = vld [vmem:[#allocation8 + $0xc] sm:$0xf]
        %v653 = vld [vmem:[%s7] sm:$0x1]
        %v655 = vperm.slane %v653, 0
        %v658 = vunpack.c.l.b16 %v647
        %v659 = vpack.c.b16 %v658, %v658
        %660 = vrot.lane.b32.xlu0 %v659, 96
        %v661 = vpop.permute.xlu0 %660
        %vm662 = vcmask 64512
        %v664 = vsel %vm662, %v647, 0
        %v667 = vsel %vm662, %v661, 0
        %669 = vmatpush.bf16.xpose.msra.mxu0 0
        %670 = vmatpush.bf16.xpose.msra.mxu0 0
        %671 = vmatpush.bf16.xpose.msra.mxu0 0
        %672 = vmatpush.bf16.xpose.msra.mxu0 0
        %673 = vmatpush.bf16.xpose.msra.mxu0 0
        %674 = vmatpush.bf16.xpose.msra.mxu0 0
        %675 = vmatpush.bf16.xpose.msra.mxu0 0
        %676 = vmatpush.bf16.xpose.msra.mxu0 %v667
        %677 = vmatmul.bf16.gmra.mxu0 %v664
        %v678 = vpop.f32.mrf.mxu0
        %v679 = vadd.f32 %v648, %v678
        %v680 = vpop.f32.mrf.mxu0
        %681 = vdwg.mxu0
        %v682 = vsel %vm662, %v679, -inf
        %683 = vmax.xlane.f32.xlu0 %v682
        %v684 = vpop.xlane.xlu0 %683
        %v685 = vsub.f32 %v679, %v684
        %v686 = vmul.f32 %v685, 1.442695
        %v687 = vpow.pop %v686
        %v688 = vsel %vm662, %v687, 0.0
        %689 = vadd.xlane.f32.xlu0 %v688
        %v690 = vpop.xlane.xlu0 %689
        %v691 = vrcp.pop %v690
        %v692 = vmul.f32 %v687, %v691
        %v693 = vpack.c.bf16 %v692, %v692
        %694 = vrot.lane.b32.xlu0 %v659, 64
        %v695 = vpop.permute.xlu0 %694
        %v697 = vsel %vm662, %v693, 0
        %vm699 = vcmask 1043456
        %v701 = vsel %vm699, %v695, 0
        %703 = vmatpush.bf16.msra.mxu0 0
        %704 = vmatpush.bf16.msra.mxu0 0
        %705 = vmatpush.bf16.msra.mxu0 0
        %706 = vmatpush.bf16.msra.mxu0 0
        %707 = vmatpush.bf16.msra.mxu0 0
        %708 = vmatpush.bf16.msra.mxu0 0
        %709 = vmatpush.bf16.msra.mxu0 0
        %710 = vmatpush.bf16.msra.mxu0 %v701
        %711 = vmatmul.bf16.gmra.mxu0 %v697
        %v712 = vpop.f32.mrf.mxu0
        %v713 = vadd.f32 0.0, %v712
        %v714 = vpop.f32.mrf.mxu0
        %715 = vdwg.mxu0
        %v716 = vpack.c.bf16 %v713, %v713
        %v718 = vsel %vm662, %v716, 0
        %v721 = vsel %vm699, %v649, 0
        %723 = vmatpush.bf16.msra.mxu0 0
        %724 = vmatpush.bf16.msra.mxu0 0
        %725 = vmatpush.bf16.msra.mxu0 0
        %726 = vmatpush.bf16.msra.mxu0 0
        %727 = vmatpush.bf16.msra.mxu0 0
        %728 = vmatpush.bf16.msra.mxu0 0
        %729 = vmatpush.bf16.msra.mxu0 0
        %730 = vmatpush.bf16.msra.mxu0 %v721
        %731 = vmatmul.bf16.gmra.mxu0 %v718
        %v732 = vpop.f32.mrf.mxu0
        %v733 = vadd.f32 0.0, %v732
        %v734 = vpop.f32.mrf.mxu0
        %735 = vdwg.mxu0
        %v736 = vadd.f32 %v655, %v733
        %737 = vrot.lane.b32.xlu0 %v659, 120
        %v738 = vpop.permute.xlu0 %737
        %739 = vrot.lane.b32.xlu0 %v659, 88
        %v740 = vpop.permute.xlu0 %739
        %v742 = vsel %vm662, %v738, 0
        %v745 = vsel %vm662, %v740, 0
        %747 = vmatpush.bf16.xpose.msra.mxu0 0
        %748 = vmatpush.bf16.xpose.msra.mxu0 0
        %749 = vmatpush.bf16.xpose.msra.mxu0 0
        %750 = vmatpush.bf16.xpose.msra.mxu0 0
        %751 = vmatpush.bf16.xpose.msra.mxu0 0
        %752 = vmatpush.bf16.xpose.msra.mxu0 0
        %753 = vmatpush.bf16.xpose.msra.mxu0 0
        %754 = vmatpush.bf16.xpose.msra.mxu0 %v745
        %755 = vmatmul.bf16.gmra.mxu0 %v742
        %v756 = vpop.f32.mrf.mxu0
        %v757 = vadd.f32 %v648, %v756
        %v758 = vpop.f32.mrf.mxu0
        %759 = vdwg.mxu0
        %v760 = vsel %vm662, %v757, -inf
        %761 = vmax.xlane.f32.xlu0 %v760
        %v762 = vpop.xlane.xlu0 %761
        %v763 = vsub.f32 %v757, %v762
        %v764 = vmul.f32 %v763, 1.442695
        %v765 = vpow.pop %v764
        %v766 = vsel %vm662, %v765, 0.0
        %767 = vadd.xlane.f32.xlu0 %v766
        %v768 = vpop.xlane.xlu0 %767
        %v769 = vrcp.pop %v768
        %v770 = vmul.f32 %v765, %v769
        %v771 = vpack.c.bf16 %v770, %v770
        %772 = vrot.lane.b32.xlu0 %v659, 56
        %v773 = vpop.permute.xlu0 %772
        %v775 = vsel %vm662, %v771, 0
        %v778 = vsel %vm699, %v773, 0
        %780 = vmatpush.bf16.msra.mxu0 0
        %781 = vmatpush.bf16.msra.mxu0 0
        %782 = vmatpush.bf16.msra.mxu0 0
        %783 = vmatpush.bf16.msra.mxu0 0
        %784 = vmatpush.bf16.msra.mxu0 0
        %785 = vmatpush.bf16.msra.mxu0 0
        %786 = vmatpush.bf16.msra.mxu0 0
        %787 = vmatpush.bf16.msra.mxu0 %v778
        %788 = vmatmul.bf16.gmra.mxu0 %v775
        %v789 = vpop.f32.mrf.mxu0
        %v790 = vadd.f32 0.0, %v789
        %v791 = vpop.f32.mrf.mxu0
        %792 = vdwg.mxu0
        %v793 = vpack.c.bf16 %v790, %v790
        %v795 = vsel %vm662, %v793, 0
        %v798 = vsel %vm699, %v650, 0
        %800 = vmatpush.bf16.msra.mxu0 0
        %801 = vmatpush.bf16.msra.mxu0 0
        %802 = vmatpush.bf16.msra.mxu0 0
        %803 = vmatpush.bf16.msra.mxu0 0
        %804 = vmatpush.bf16.msra.mxu0 0
        %805 = vmatpush.bf16.msra.mxu0 0
        %806 = vmatpush.bf16.msra.mxu0 0
        %807 = vmatpush.bf16.msra.mxu0 %v798
        %808 = vmatmul.bf16.gmra.mxu0 %v795
        %v809 = vpop.f32.mrf.mxu0
        %v810 = vadd.f32 0.0, %v809
        %v811 = vpop.f32.mrf.mxu0
        %812 = vdwg.mxu0
        %v813 = vadd.f32 %v736, %v810
        %814 = vrot.lane.b32.xlu0 %v659, 112
        %v815 = vpop.permute.xlu0 %814
        %816 = vrot.lane.b32.xlu0 %v659, 80
        %v817 = vpop.permute.xlu0 %816
        %v819 = vsel %vm662, %v815, 0
        %v822 = vsel %vm662, %v817, 0
        %824 = vmatpush.bf16.xpose.msra.mxu0 0
        %825 = vmatpush.bf16.xpose.msra.mxu0 0
        %826 = vmatpush.bf16.xpose.msra.mxu0 0
        %827 = vmatpush.bf16.xpose.msra.mxu0 0
        %828 = vmatpush.bf16.xpose.msra.mxu0 0
        %829 = vmatpush.bf16.xpose.msra.mxu0 0
        %830 = vmatpush.bf16.xpose.msra.mxu0 0
        %831 = vmatpush.bf16.xpose.msra.mxu0 %v822
        %832 = vmatmul.bf16.gmra.mxu0 %v819
        %v833 = vpop.f32.mrf.mxu0
        %v834 = vadd.f32 %v648, %v833
        %v835 = vpop.f32.mrf.mxu0
        %836 = vdwg.mxu0
        %v837 = vsel %vm662, %v834, -inf
        %838 = vmax.xlane.f32.xlu0 %v837
        %v839 = vpop.xlane.xlu0 %838
        %v840 = vsub.f32 %v834, %v839
        %v841 = vmul.f32 %v840, 1.442695
        %v842 = vpow.pop %v841
        %v843 = vsel %vm662, %v842, 0.0
        %844 = vadd.xlane.f32.xlu0 %v843
        %v845 = vpop.xlane.xlu0 %844
        %v846 = vrcp.pop %v845
        %v847 = vmul.f32 %v842, %v846
        %v848 = vpack.c.bf16 %v847, %v847
        %849 = vrot.lane.b32.xlu0 %v659, 48
        %v850 = vpop.permute.xlu0 %849
        %v852 = vsel %vm662, %v848, 0
        %v855 = vsel %vm699, %v850, 0
        %857 = vmatpush.bf16.msra.mxu0 0
        %858 = vmatpush.bf16.msra.mxu0 0
        %859 = vmatpush.bf16.msra.mxu0 0
        %860 = vmatpush.bf16.msra.mxu0 0
        %861 = vmatpush.bf16.msra.mxu0 0
        %862 = vmatpush.bf16.msra.mxu0 0
        %863 = vmatpush.bf16.msra.mxu0 0
        %864 = vmatpush.bf16.msra.mxu0 %v855
        %865 = vmatmul.bf16.gmra.mxu0 %v852
        %v866 = vpop.f32.mrf.mxu0
        %v867 = vadd.f32 0.0, %v866
        %v868 = vpop.f32.mrf.mxu0
        %869 = vdwg.mxu0
        %v870 = vpack.c.bf16 %v867, %v867
        %v872 = vsel %vm662, %v870, 0
        %v875 = vsel %vm699, %v651, 0
        %877 = vmatpush.bf16.msra.mxu0 0
        %878 = vmatpush.bf16.msra.mxu0 0
        %879 = vmatpush.bf16.msra.mxu0 0
        %880 = vmatpush.bf16.msra.mxu0 0
        %881 = vmatpush.bf16.msra.mxu0 0
        %882 = vmatpush.bf16.msra.mxu0 0
        %883 = vmatpush.bf16.msra.mxu0 0
        %884 = vmatpush.bf16.msra.mxu0 %v875
        %885 = vmatmul.bf16.gmra.mxu0 %v872
        %v886 = vpop.f32.mrf.mxu0
        %v887 = vadd.f32 0.0, %v886
        %v888 = vpop.f32.mrf.mxu0
        %889 = vdwg.mxu0
        %v890 = vadd.f32 %v813, %v887
        %891 = vrot.lane.b32.xlu0 %v659, 104
        %v892 = vpop.permute.xlu0 %891
        %893 = vrot.lane.b32.xlu0 %v659, 72
        %v894 = vpop.permute.xlu0 %893
        %v896 = vsel %vm662, %v892, 0
        %v899 = vsel %vm662, %v894, 0
        %901 = vmatpush.bf16.xpose.msra.mxu0 0
        %902 = vmatpush.bf16.xpose.msra.mxu0 0
        %903 = vmatpush.bf16.xpose.msra.mxu0 0
        %904 = vmatpush.bf16.xpose.msra.mxu0 0
        %905 = vmatpush.bf16.xpose.msra.mxu0 0
        %906 = vmatpush.bf16.xpose.msra.mxu0 0
        %907 = vmatpush.bf16.xpose.msra.mxu0 0
        %908 = vmatpush.bf16.xpose.msra.mxu0 %v899
        %909 = vmatmul.bf16.gmra.mxu0 %v896
        %v910 = vpop.f32.mrf.mxu0
        %v911 = vadd.f32 %v648, %v910
        %v912 = vpop.f32.mrf.mxu0
        %913 = vdwg.mxu0
        %v914 = vsel %vm662, %v911, -inf
        %915 = vmax.xlane.f32.xlu0 %v914
        %v916 = vpop.xlane.xlu0 %915
        %v917 = vsub.f32 %v911, %v916
        %v918 = vmul.f32 %v917, 1.442695
        %v919 = vpow.pop %v918
        %v920 = vsel %vm662, %v919, 0.0
        %921 = vadd.xlane.f32.xlu0 %v920
        %v922 = vpop.xlane.xlu0 %921
        %v923 = vrcp.pop %v922
        %v924 = vmul.f32 %v919, %v923
        %v925 = vpack.c.bf16 %v924, %v924
        %926 = vrot.lane.b32.xlu0 %v659, 40
        %v927 = vpop.permute.xlu0 %926
        %v929 = vsel %vm662, %v925, 0
        %v932 = vsel %vm699, %v927, 0
        %934 = vmatpush.bf16.msra.mxu0 0
        %935 = vmatpush.bf16.msra.mxu0 0
        %936 = vmatpush.bf16.msra.mxu0 0
        %937 = vmatpush.bf16.msra.mxu0 0
        %938 = vmatpush.bf16.msra.mxu0 0
        %939 = vmatpush.bf16.msra.mxu0 0
        %940 = vmatpush.bf16.msra.mxu0 0
        %941 = vmatpush.bf16.msra.mxu0 %v932
        %942 = vmatmul.bf16.gmra.mxu0 %v929
        %v943 = vpop.f32.mrf.mxu0
        %v944 = vadd.f32 0.0, %v943
        %v945 = vpop.f32.mrf.mxu0
        %946 = vdwg.mxu0
        %v947 = vpack.c.bf16 %v944, %v944
        %v949 = vsel %vm662, %v947, 0
        %v952 = vsel %vm699, %v652, 0
        %954 = vmatpush.bf16.msra.mxu0 0
        %955 = vmatpush.bf16.msra.mxu0 0
        %956 = vmatpush.bf16.msra.mxu0 0
        %957 = vmatpush.bf16.msra.mxu0 0
        %958 = vmatpush.bf16.msra.mxu0 0
        %959 = vmatpush.bf16.msra.mxu0 0
        %960 = vmatpush.bf16.msra.mxu0 0
        %961 = vmatpush.bf16.msra.mxu0 %v952
        %962 = vmatmul.bf16.gmra.mxu0 %v949
        %v963 = vpop.f32.mrf.mxu0
        %v964 = vadd.f32 0.0, %v963
        %v965 = vpop.f32.mrf.mxu0
        %966 = vdwg.mxu0
        %v967 = vadd.f32 %v890, %v964
        %v968 = vadd.f32 %v967, %v609
        %v969 = vld [vmem:[%s8] sm:$0x1]
        %v970 = vld [vmem:[%s9] sm:$0x1]
        %v971 = vsel %vm570, %v968, 0.0
        %972 = vadd.xlane.f32.xlu0 %v971
        %v973 = vpop.xlane.xlu0 %972
        %v974 = vmul.f32 %v973, %v580
        %v975 = vmul.f32 %v968, %v968
        %v976 = vsel %vm570, %v975, 0.0
        %977 = vadd.xlane.f32.xlu0 %v976
        %v978 = vpop.xlane.xlu0 %977
        %v979 = vmul.f32 %v978, %v580
        %v980 = vmul.f32 %v974, %v974
        %v981 = vsub.f32 %v979, %v980
        %v982 = vsub.f32 %v968, %v974
        %v983 = vadd.f32 %v981, 1e-05
        %v984 = vrsqrt.pop %v983
        %v985 = vmul.f32 %v984, %v983
        %v986 = vmul.f32 %v985, %v984
        %v987 = vmul.f32 0.5, %v986
        %v988 = vsub.f32 1.5, %v987
        %v989 = vmul.f32 %v984, %v988
        %vm990 = vweird.f32 %v983
        %vm991 = vweird.f32 %v984
        %vm992 = vmor %vm990, %vm991
        %v993 = vsel %vm992, %v984, %v989
        %v994 = vmul.f32 %v982, %v993
        %v996 = vperm.slane %v969, 0
        %v998 = vmul.f32 %v994, %v996
        %v1000 = vperm.slane %v970, 0
        %v1002 = vadd.f32 %v998, %v1000
        %v1003 = vpack.c.bf16 %v1002, %v1002
        %v1004 = vld [vmem:[#allocation10] sm:$0xf]
        %v1005 = vld [vmem:[#allocation10 + $0x4] sm:$0xf]
        %v1006 = vld [vmem:[#allocation10 + $0x8] sm:$0xf]
        %v1007 = vld [vmem:[#allocation10 + $0xc] sm:$0xf]
        %v1008 = vld [vmem:[%s11] sm:$0x1]
        %v1010 = vperm.slane %v1008, 0
        %v1016 = vunpack.c.l.b16 %v1004
        %v1017 = vunpack.c.l.b16 %v1005
        %v1018 = vunpack.c.l.b16 %v1006
        %v1019 = vunpack.c.l.b16 %v1007
        %v1020 = vpack.c.b16 %v1017, %v1016
        %v1021 = vpack.c.b16 %v1019, %v1018
        %v1025 = vsel %vm570, %v1003, 0
        %1027 = vmatpush.bf16.msra.mxu0 0
        %1028 = vmatpush.bf16.msra.mxu0 0
        %1029 = vmatpush.bf16.msra.mxu0 0
        %1030 = vmatpush.bf16.msra.mxu0 0
        %1031 = vmatpush.bf16.msra.mxu0 0
        %1032 = vmatpush.bf16.msra.mxu0 0
        %1033 = vmatpush.bf16.msra.mxu0 %v1021
        %1034 = vmatpush.bf16.msra.mxu0 %v1020
        %1035 = vmatmul.bf16.gmra.mxu0 %v1025
        %v1036 = vpop.f32.mrf.mxu0
        %v1037 = vadd.f32 %v1010, %v1036
        %v1038 = vpop.f32.mrf.mxu0
        %1039 = vdwg.mxu0
        %v1040 = vmax.f32 %v1037, 0.0
        %v1041 = vpack.c.bf16 %v1040, %v1040
        %v1042 = vld [vmem:[#allocation11] sm:$0xf]
        %v1043 = vld [vmem:[#allocation11 + $0x4] sm:$0xf]
        %v1044 = vld [vmem:[#allocation11 + $0x8] sm:$0xf]
        %v1045 = vld [vmem:[#allocation11 + $0xc] sm:$0xf]
        %v1046 = vld [vmem:[%s13] sm:$0x1]
        %v1048 = vperm.slane %v1046, 0
        %v1054 = vunpack.c.l.b16 %v1042
        %v1055 = vunpack.c.l.b16 %v1043
        %v1056 = vunpack.c.l.b16 %v1044
        %v1057 = vunpack.c.l.b16 %v1045
        %v1058 = vpack.c.b16 %v1055, %v1054
        %v1059 = vpack.c.b16 %v1057, %v1056
        %v1063 = vsel %vm570, %v1041, 0
        %1065 = vmatpush.bf16.msra.mxu0 0
        %1066 = vmatpush.bf16.msra.mxu0 0
        %1067 = vmatpush.bf16.msra.mxu0 0
        %1068 = vmatpush.bf16.msra.mxu0 0
        %1069 = vmatpush.bf16.msra.mxu0 0
        %1070 = vmatpush.bf16.msra.mxu0 0
        %1071 = vmatpush.bf16.msra.mxu0 %v1059
        %1072 = vmatpush.bf16.msra.mxu0 %v1058
        %1073 = vmatmul.bf16.gmra.mxu0 %v1063
        %v1074 = vpop.f32.mrf.mxu0
        %v1075 = vadd.f32 %v1048, %v1074
        %v1076 = vpop.f32.mrf.mxu0
        %1077 = vdwg.mxu0
        %v1078 = vadd.f32 %v1075, %v1002
        %1079 = vst.msk [vmem:[%s565] sm:$0xff] %vm570, %v1078
        %s1080 = sand.u32 %s341, 1
        %s1081 = scalar_lea.sflag [#allocation4], %s1080
        %s1082 = sand.u32 %s341, 1
        %s1083 = smul.addr %s1082, 8
        %s1084 = scalar_lea.vmem [#allocation13], %s1083
        // Predicated region
        $region101: #{tpu_custom_call.1} parent=75 // pred_check
          %p1085 = pneg %p351
        $region102: #{tpu_custom_call.1} parent=75 // pred_check_branch
          %1087 = sbr.rel (%p1085) target = $region104
        $region103: #{tpu_custom_call.1} parent=75 // pred_region
          %1089 = vsyncadd %s1081, 0
          %s1090 = smul.addr %s34, 8
          %s1091 = scalar_lea.hbm %s14, %s1090
          %s1093 = sshll.u32 %s1084, 4
          %s1094 = int_to_ptr.vmem [resolvable:$true] %s1093
          %s1095 = sshll.u32 %s1091, 4
          %s1096 = int_to_ptr.hbm [resolvable:$true] %s1095
          %1098 = dma.vmem_to_hbm [thread:$0]  %s1094, 128, %s1096, %s1081
        $region104: #{tpu_custom_call.1} parent=75 // pred_fallthru
          _
      $region76: #{tpu_custom_call.1} parent=5 // pred_fallthru
        _
      %p1099 = scmp.le.s32.totalorder 2, %s29
      // Predicated region
      $region105: #{tpu_custom_call.1} parent=5 // pred_check
        %p1100 = pneg %p1099
      $region106: #{tpu_custom_call.1} parent=5 // pred_check_branch
        %1102 = sbr.rel (%p1100) target = $region108
      $region107: #{tpu_custom_call.1} parent=5 // pred_region
        %s1103 = ssub.s32 %s29, 2
        // Predicated region
        $region109: #{tpu_custom_call.1} parent=107 // pred_check
          %p1104 = pneg %p357
        $region110: #{tpu_custom_call.1} parent=107 // pred_check_branch
          %1106 = sbr.rel (%p1104) target = $region112
        $region111: #{tpu_custom_call.1} parent=107 // pred_region
          %s1107 = sand.u32 %s342, 1
          %s1108 = scalar_lea.sflag [#allocation4], %s1107
          %s1109 = sand.u32 %s342, 1
          %s1110 = smul.addr %s1109, 8
          %s1111 = scalar_lea.vmem [#allocation13], %s1110
          %1113 = dma.done %s1108, 128
        $region112: #{tpu_custom_call.1} parent=107 // pred_fallthru
          _
      $region108: #{tpu_custom_call.1} parent=5 // pred_fallthru
        _
    $region6: #{tpu_custom_call.1} parent=1 // loop_footer
      %s33 = sadd.s32 1, %s29
    $region7: #{tpu_custom_call.1} parent=1 // loop_footer_branch
      %28 = sbr.rel target = $region3
    $region8: #{tpu_custom_call.1} parent=1 // loop_exit
      _
    %1114 = vsyncpa [#allocation3], 1
    %s1115 = scalar_lea.sflag [#allocation3], 1
    %1116 = vsyncpa %s1115, 1
    %1117 = vsyncpa [#allocation6], 1
    %1118 = vsyncpa [#allocation9], 1
    %1119 = vsyncpa [#allocation12], 1
    %1120 = vsyncpa [#allocation4], 1
    %s1121 = scalar_lea.sflag [#allocation4], 1
    %1122 = vsyncpa %s1121, 1

</llo_original>
